<compile_context>
chip_gen: v7x
topology: tpu7x:2x2x1
jax: 0.10.0
libtpu: 0.0.40
codegen_flags: <defaults>
</compile_context>

<pallas_src>
import functools

import jax
import jax.numpy as jnp
from jax.experimental import pallas as pl
from jax.experimental.pallas import tpu as pltpu

_LANE = 128
_SUB = 16            # sublane tile for packed (bf16) blocks


def _round_up(x, m):
    return ((x + m - 1) // m) * m


def _cdiv(a, b):
    return -(-a // b)


def _vmem_capacity_bytes():
    try:
        return int(pltpu.get_tpu_info().vmem_capacity_bytes)
    except Exception:
        return 64 * 1024 * 1024      # conservative default: v7x per-core VMEM


def _sepconv_kernel(x_ref, lh_ref, rh_ref, wd_ref, bd_ref, wp_ref, bp_ref,
                    o_ref, win_ref, fir_ref, *, seq_len):
    # x_ref  : (1, TL, H)      main seq tile (compute dtype)
    # lh_ref : (1, HALO, H)    last HALO rows of the previous tile (clamped idx)
    # rh_ref : (1, HALO, H)    first HALO rows of the next tile (clamped idx)
    # wd_ref : (F, H) f32      depthwise taps;  bd_ref: (1, H) f32 bias
    # wp_ref : (H, TO)         pointwise weight slice;  bp_ref: (1, TO) f32
    # o_ref  : (1, TL, TO)     output tile
    # win_ref: (TL+2*HALO, H)  haloed window scratch (compute dtype)
    # fir_ref: (TL, H)         depthwise-result cache, reused across O tiles
    l = pl.program_id(1)
    o = pl.program_id(2)
    TL = x_ref.shape[1]
    HALO = lh_ref.shape[1]
    F = wd_ref.shape[0]
    pad = F // 2
    W, H = win_ref.shape

    @pl.when(o == 0)
    def _():
        # Assemble the haloed window once per seq tile (sublane-aligned stores).
        win_ref[0:HALO, :] = lh_ref[0]
        win_ref[HALO:HALO + TL, :] = x_ref[0]
        win_ref[HALO + TL:W, :] = rh_ref[0]

        # Conv zero-padding at the left edge (also discards the clamped-index
        # left-halo data of the first tile).
        @pl.when(l == 0)
        def _():
            win_ref[0:HALO, :] = jnp.zeros((HALO, H), win_ref.dtype)

        # Conv zero-padding past the end of the sequence; also neutralizes any
        # garbage rows brought in by partial / clamped boundary blocks.  Only
        # boundary tiles pay this read-modify-write.
        base = l * TL - HALO
        @pl.when(base + W > seq_len)
        def _():
            rows = base + jax.lax.broadcasted_iota(jnp.int32, (W, 1), 0)
            win_ref[...] = jnp.where(rows < seq_len, win_ref[...],
                                     0).astype(win_ref.dtype)

        # Depthwise FIR along seq: taps hoisted, f32 accumulation on the VPU.
        wd = wd_ref[...]
        s0 = HALO - pad
        acc = win_ref[s0:s0 + TL, :].astype(jnp.float32) * wd[0:1, :]
        for k in range(1, F):
            acc = acc + win_ref[s0 + k:s0 + k + TL, :].astype(jnp.float32) * wd[k:k + 1, :]
        acc = acc + bd_ref[...]
        fir_ref[...] = acc.astype(fir_ref.dtype)

    # Pointwise (1x1) conv == channel matmul on the MXU (f32 accumulate).
    y = jnp.dot(fir_ref[...], wp_ref[...], preferred_element_type=jnp.float32)
    y = y + bp_ref[...]
    o_ref[0] = y.astype(o_ref.dtype)


def _pick_tiles(L_out, H, O_pad, halo, fsize, in_bytes, out_bytes, budget):
    """Pick (seq tile, O tile) against a *real* VMEM footprint model."""
    # O tile: the whole (padded) O if small, else the largest lane-aligned
    # tile that divides O_pad.
    if O_pad <= 1024:
        TO = O_pad
    else:
        TO = next(t for t in (1024, 512, 256, 128) if O_pad % t == 0)

    def footprint(tl, to):
        win = (tl + 2 * halo) * H * in_bytes                 # window scratch (x1)
        fir = tl * H * in_bytes                              # FIR cache (x1)
        xin = 2 * (tl + 2 * halo) * H * in_bytes             # main+halos, dbl-buffered
        wgt = 2 * (fsize * H * 4 + H * 4 + H * to * in_bytes + to * 4)  # weights, dbl-buffered
        out = 2 * tl * to * out_bytes                        # output tile, dbl-buffered
        return win + fir + xin + wgt + out

    TL = 1024
    # Shrink the weight/output slice first (it scales with TO), then the seq tile.
    while TO > 128 and TO % 256 == 0 and footprint(TL, TO) > budget:
        TO //= 2
    while TL > max(128, halo) and footprint(TL, TO) > budget:
        TL //= 2
    # Keep >= 2 seq tiles when the sequence allows it (pipeline depth + both
    # v7x TensorCores busy), but don't go below 256 rows for that reason alone.
    while TL > 256 and _cdiv(L_out, TL) < 2:
        TL //= 2
    TL = max(halo, min(TL, _round_up(L_out, halo)))
    TL = _round_up(TL, halo)          # halo blocks must tile the seq tile
    return TL, TO, footprint(TL, TO)


def sep_conv(seq, wd, bd, wp, bp, fsize, *,
             compute_dtype=jnp.bfloat16, out_dtype=None):
    """Depthwise-separable 1D conv matching PyTorch SepConv.forward.

    seq: [B, L, H] ; wd: [H, 1, F] ; bd: [H] ; wp: [O, H, 1] ; bp: [O].
    compute_dtype controls the streamed-input / MXU precision (bf16 default:
    the kernel is HBM-bound on all generations; pass jnp.float32 for a
    higher-precision fallback).  out_dtype defaults to seq.dtype.
    """
    B, L, H = seq.shape
    O = wp.shape[0]
    F = int(fsize)
    pad = F // 2
    L_out = L + 2 * pad - F + 1           # matches PyTorch Conv1d output length
    if out_dtype is None:
        out_dtype = seq.dtype

    in_bytes = jnp.dtype(compute_dtype).itemsize
    out_bytes = jnp.dtype(out_dtype).itemsize

    # Halo rows on each side of a seq tile, sublane-aligned for packed dtypes.
    halo = _round_up(max(pad, F - 1 - pad, 1), _SUB)

    O_pad = _round_up(O, _LANE)           # lane-dense output stores
    vmem_cap = _vmem_capacity_bytes()
    budget = int(0.6 * vmem_cap)
    TL, TO, footprint = _pick_tiles(L_out, H, O_pad, halo, F,
                                    in_bytes, out_bytes, budget)

    nsl = _cdiv(L_out, TL)                # seq tiles
    nso = O_pad // TO                     # output-channel tiles
    tlh = TL // halo                      # halo blocks per seq tile
    n_main = _cdiv(L, TL)                 # main blocks available in seq
    n_halo = _cdiv(L, halo)               # halo blocks available in seq

    x = seq.astype(compute_dtype)

    # Weight layouts: depthwise (F, H) f32, pointwise (H, O_pad) compute dtype.
    wd_k = jnp.transpose(wd[:, 0, :], (1, 0)).astype(jnp.float32)   # (F, H)
    bd_k = bd.reshape(1, H).astype(jnp.float32)
    wp_k = jnp.transpose(wp[:, :, 0], (1, 0))                       # (H, O)
    bp_k = bp.reshape(1, O).astype(jnp.float32)
    if O_pad != O:
        wp_k = jnp.pad(wp_k, ((0, 0), (0, O_pad - O)))
        bp_k = jnp.pad(bp_k, ((0, 0), (0, O_pad - O)))
    wp_k = wp_k.astype(compute_dtype)

    def main_map(b, l, o):                # main seq tile (clamped at the end)
        return (b, jnp.minimum(l, n_main - 1), 0)

    def lhalo_map(b, l, o):               # last `halo` rows of the previous tile
        return (b, jnp.maximum(l * tlh - 1, 0), 0)

    def rhalo_map(b, l, o):               # first `halo` rows of the next tile
        return (b, jnp.minimum((l + 1) * tlh, n_halo - 1), 0)

    kernel = functools.partial(_sepconv_kernel, seq_len=L)

    cost = pl.CostEstimate(
        flops=2 * B * L_out * H * (F + O_pad),
        transcendentals=0,
        bytes_accessed=(B * L * H * in_bytes + H * O_pad * in_bytes
                        + B * L_out * O_pad * out_bytes),
    )

    out = pl.pallas_call(
        kernel,
        out_shape=jax.ShapeDtypeStruct((B, L_out, O_pad), out_dtype),
        grid_spec=pltpu.PrefetchScalarGridSpec(
            num_scalar_prefetch=0,
            grid=(B, nsl, nso),
            in_specs=[
                pl.BlockSpec((1, TL, H), main_map),
                pl.BlockSpec((1, halo, H), lhalo_map),
                pl.BlockSpec((1, halo, H), rhalo_map),
                pl.BlockSpec((F, H), lambda b, l, o: (0, 0)),
                pl.BlockSpec((1, H), lambda b, l, o: (0, 0)),
                pl.BlockSpec((H, TO), lambda b, l, o: (0, o)),
                pl.BlockSpec((1, TO), lambda b, l, o: (0, o)),
            ],
            out_specs=pl.BlockSpec((1, TL, TO), lambda b, l, o: (b, l, o)),
            scratch_shapes=[
                pltpu.VMEM((TL + 2 * halo, H), compute_dtype),   # haloed window
                pltpu.VMEM((TL, H), compute_dtype),              # FIR cache
            ],
        ),
        compiler_params=pltpu.CompilerParams(
            dimension_semantics=("parallel", "parallel", "arbitrary"),
            vmem_limit_bytes=int(min(0.9 * vmem_cap,
                                     max(2 * footprint, 32 * 1024 * 1024))),
        ),
        cost_estimate=cost,
    )(x, x, x, wd_k, bd_k, wp_k, bp_k)

    if O_pad != O:
        out = out[..., :O]
    return out


def _reference(seq, wd, bd, wp, bp, fsize):
    """Pure-JAX f32 reference mirroring the PyTorch forward."""
    B, L, H = seq.shape
    pad = fsize // 2
    L_out = L + 2 * pad - fsize + 1
    x_pad = jnp.pad(seq, ((0, 0), (pad, pad), (0, 0))).astype(jnp.float32)
    dw = jnp.zeros((B, L_out, H), jnp.float32)
    for k in range(fsize):
        dw = dw + x_pad[:, k:k + L_out, :] * wd[:, 0, k][None, None, :]
    dw = dw + bd[None, None, :]
    y = jnp.einsum("blh,oh->blo", dw, wp[:, :, 0]) + bp[None, None, :]
    return y


if __name__ == "__main__":
    # Small but lane/MXU-friendly shapes: channels are a multiple of 128 and
    # the seq length spans multiple seq tiles so the pipeline really runs.
    B, L, hdim, odim, fsize = 2, 300, 128, 128, 3

    key = jax.random.PRNGKey(0)
    k_seq, k_wd, k_wp = jax.random.split(key, 3)

    seq = jax.random.normal(k_seq, (B, L, hdim), dtype=jnp.float32)

    # kaiming_normal_ (fan_in, gain=sqrt(2)) — deterministic synthetic init.
    wd = jax.random.normal(k_wd, (hdim, 1, fsize), dtype=jnp.float32) * jnp.sqrt(2.0 / fsize)
    bd = jnp.zeros((hdim,), jnp.float32)
    wp = jax.random.normal(k_wp, (odim, hdim, 1), dtype=jnp.float32) * jnp.sqrt(2.0 / hdim)
    bp = jnp.zeros((odim,), jnp.float32)

    out = jax.block_until_ready(sep_conv(seq, wd, bd, wp, bp, fsize))
    ref = _reference(seq, wd, bd, wp, bp, fsize)

    assert out.shape == (B, L, odim), out.shape
    max_err = float(jnp.max(jnp.abs(out - ref)))
    # Tolerance reflects the bf16 streamed input and bf16 x bf16 -> f32 MXU matmul.
    assert jnp.allclose(out, ref, atol=1e-1, rtol=5e-2), (
        f"mismatch vs reference: max_err={max_err}")

    print("KERNEL_OK")
</pallas_src>

<mosaic_0001>
module attributes {stable_mosaic.version = 11 : i64} {
  func.func @_sepconv_kernel(%arg0: i32, %arg1: i32, %arg2: i32, %arg3: memref<1x256x128xbf16, #tpu.memory_space<vmem>>, %arg4: memref<1x16x128xbf16, #tpu.memory_space<vmem>>, %arg5: memref<1x16x128xbf16, #tpu.memory_space<vmem>>, %arg6: memref<3x128xf32, #tpu.memory_space<vmem>>, %arg7: memref<1x128xf32, #tpu.memory_space<vmem>>, %arg8: memref<128x128xbf16, #tpu.memory_space<vmem>>, %arg9: memref<1x128xf32, #tpu.memory_space<vmem>>, %arg10: memref<1x256x128xf32, #tpu.memory_space<vmem>>, %arg11: memref<288x128xbf16, #tpu.memory_space<vmem>>, %arg12: memref<256x128xbf16, #tpu.memory_space<vmem>>) attributes {dimension_semantics = [#tpu.dimension_semantics<parallel>, #tpu.dimension_semantics<parallel>, #tpu.dimension_semantics<arbitrary>], iteration_bounds = array<i64: 2, 2, 1>, scalar_prefetch = 0 : i64, scratch_operands = 2 : i64, tpu.core_type = #tpu.core_type<tc>, window_params = [{transform_indices = @transform_0, window_bounds = array<i64: 1, 256, 128>}, {transform_indices = @transform_1, window_bounds = array<i64: 1, 16, 128>}, {transform_indices = @transform_2, window_bounds = array<i64: 1, 16, 128>}, {pipeline_mode = #tpu.pipeline_mode<synchronous>, transform_indices = @transform_3, window_bounds = array<i64: 3, 128>}, {pipeline_mode = #tpu.pipeline_mode<synchronous>, transform_indices = @transform_4, window_bounds = array<i64: 1, 128>}, {transform_indices = @transform_5, window_bounds = array<i64: 128, 128>}, {transform_indices = @transform_6, window_bounds = array<i64: 1, 128>}, {transform_indices = @transform_7, window_bounds = array<i64: 1, 256, 128>}]} {
    %c0_i32 = arith.constant 0 : i32
    %0 = arith.cmpi eq, %arg2, %c0_i32 : i32
    %1 = arith.extui %0 : i1 to i32
    %c0_i32_0 = arith.constant 0 : i32
    %2 = arith.cmpi ne, %1, %c0_i32_0 : i32
    scf.if %2 {
      %c0_9 = arith.constant 0 : index
      %c0_10 = arith.constant 0 : index
      %c0_11 = arith.constant 0 : index
      %12 = vector.load %arg4[%c0_9, %c0_10, %c0_11] : memref<1x16x128xbf16, #tpu.memory_space<vmem>>, vector<1x16x128xbf16>
      %13 = vector.shape_cast %12 : vector<1x16x128xbf16> to vector<16x128xbf16>
      %c0_12 = arith.constant 0 : index
      %c0_13 = arith.constant 0 : index
      %14 = vector.load %arg11[%c0_12, %c0_13] : memref<288x128xbf16, #tpu.memory_space<vmem>>, vector<16x128xbf16>
      tpu.vector_store %arg11[%c0_12, %c0_13], %13 {strides = array<i32>} : memref<288x128xbf16, #tpu.memory_space<vmem>>, vector<16x128xbf16>,
      %c0_14 = arith.constant 0 : index
      %c0_15 = arith.constant 0 : index
      %c0_16 = arith.constant 0 : index
      %15 = vector.load %arg3[%c0_14, %c0_15, %c0_16] : memref<1x256x128xbf16, #tpu.memory_space<vmem>>, vector<1x256x128xbf16>
      %16 = vector.shape_cast %15 : vector<1x256x128xbf16> to vector<256x128xbf16>
      %c16 = arith.constant 16 : index
      %c0_17 = arith.constant 0 : index
      %17 = vector.load %arg11[%c16, %c0_17] : memref<288x128xbf16, #tpu.memory_space<vmem>>, vector<256x128xbf16>
      tpu.vector_store %arg11[%c16, %c0_17], %16 {strides = array<i32>} : memref<288x128xbf16, #tpu.memory_space<vmem>>, vector<256x128xbf16>,
      %c0_18 = arith.constant 0 : index
      %c0_19 = arith.constant 0 : index
      %c0_20 = arith.constant 0 : index
      %18 = vector.load %arg5[%c0_18, %c0_19, %c0_20] : memref<1x16x128xbf16, #tpu.memory_space<vmem>>, vector<1x16x128xbf16>
      %19 = vector.shape_cast %18 : vector<1x16x128xbf16> to vector<16x128xbf16>
      %c272 = arith.constant 272 : index
      %c0_21 = arith.constant 0 : index
      %20 = vector.load %arg11[%c272, %c0_21] : memref<288x128xbf16, #tpu.memory_space<vmem>>, vector<16x128xbf16>
      tpu.vector_store %arg11[%c272, %c0_21], %19 {strides = array<i32>} : memref<288x128xbf16, #tpu.memory_space<vmem>>, vector<16x128xbf16>,
      %c0_i32_22 = arith.constant 0 : i32
      %21 = arith.cmpi eq, %arg1, %c0_i32_22 : i32
      %22 = arith.extui %21 : i1 to i32
      %c0_i32_23 = arith.constant 0 : i32
      %23 = arith.cmpi ne, %22, %c0_i32_23 : i32
      scf.if %23 {
        %cst_35 = arith.constant 0.000000e+00 : bf16
        %53 = vector.broadcast %cst_35 : bf16 to vector<16x128xbf16>
        %c0_36 = arith.constant 0 : index
        %c0_37 = arith.constant 0 : index
        %54 = vector.load %arg11[%c0_36, %c0_37] : memref<288x128xbf16, #tpu.memory_space<vmem>>, vector<16x128xbf16>
        tpu.vector_store %arg11[%c0_36, %c0_37], %53 {strides = array<i32>} : memref<288x128xbf16, #tpu.memory_space<vmem>>, vector<16x128xbf16>,
      } else {
      }
      %c256_i32 = arith.constant 256 : i32
      %24 = arith.muli %arg1, %c256_i32 : i32
      %c16_i32 = arith.constant 16 : i32
      %25 = arith.subi %24, %c16_i32 : i32
      %c288_i32 = arith.constant 288 : i32
      %26 = arith.addi %25, %c288_i32 : i32
      %c300_i32 = arith.constant 300 : i32
      %27 = arith.cmpi sgt, %26, %c300_i32 : i32
      %28 = arith.extui %27 : i1 to i32
      %c0_i32_24 = arith.constant 0 : i32
      %29 = arith.cmpi ne, %28, %c0_i32_24 : i32
      scf.if %29 {
        %53 = tpu.iota {dimensions = array<i32: 0>} : vector<288x1xi32>
        %54 = vector.broadcast %25 : i32 to vector<288x1xi32>
        %55 = arith.addi %54, %53 : vector<288x1xi32>
        %c300_i32_35 = arith.constant 300 : i32
        %56 = vector.broadcast %c300_i32_35 : i32 to vector<288x1xi32>
        %57 = arith.cmpi slt, %55, %56 : vector<288x1xi32>
        %c0_36 = arith.constant 0 : index
        %c0_37 = arith.constant 0 : index
        %58 = vector.load %arg11[%c0_36, %c0_37] : memref<288x128xbf16, #tpu.memory_space<vmem>>, vector<288x128xbf16>
        %c0_i32_38 = arith.constant 0 : i32
        %59 = arith.sitofp %c0_i32_38 : i32 to bf16
        %60 = vector.shape_cast %57 : vector<288x1xi1> to vector<288x1xi1>
        %61 = vector.broadcast %60 : vector<288x1xi1> to vector<288x128xi1>
        %62 = vector.broadcast %59 : bf16 to vector<288x128xbf16>
        %63 = arith.select %61, %58, %62 : vector<288x128xi1>, vector<288x128xbf16>
        %c0_39 = arith.constant 0 : index
        %c0_40 = arith.constant 0 : index
        %64 = vector.load %arg11[%c0_39, %c0_40] : memref<288x128xbf16, #tpu.memory_space<vmem>>, vector<288x128xbf16>
        tpu.vector_store %arg11[%c0_39, %c0_40], %63 {strides = array<i32>} : memref<288x128xbf16, #tpu.memory_space<vmem>>, vector<288x128xbf16>,
      } else {
      }
      %c0_25 = arith.constant 0 : index
      %c0_26 = arith.constant 0 : index
      %30 = vector.load %arg6[%c0_25, %c0_26] : memref<3x128xf32, #tpu.memory_space<vmem>>, vector<3x128xf32>
      %c15 = arith.constant 15 : index
      %c0_27 = arith.constant 0 : index
      %31 = vector.load %arg11[%c15, %c0_27] : memref<288x128xbf16, #tpu.memory_space<vmem>>, vector<256x128xbf16>
      %32 = arith.extf %31 : vector<256x128xbf16> to vector<256x128xf32>
      %33 = vector.extract_strided_slice %30 {offsets = [0, 0], sizes = [1, 128], strides = [1, 1]} : vector<3x128xf32> to vector<1x128xf32>
      %34 = vector.broadcast %33 : vector<1x128xf32> to vector<256x128xf32>
      %35 = arith.mulf %32, %34 : vector<256x128xf32>
      %c16_28 = arith.constant 16 : index
      %c0_29 = arith.constant 0 : index
      %36 = vector.load %arg11[%c16_28, %c0_29] : memref<288x128xbf16, #tpu.memory_space<vmem>>, vector<256x128xbf16>
      %37 = arith.extf %36 : vector<256x128xbf16> to vector<256x128xf32>
      %38 = vector.extract_strided_slice %30 {offsets = [1, 0], sizes = [1, 128], strides = [1, 1]} : vector<3x128xf32> to vector<1x128xf32>
      %39 = vector.broadcast %38 : vector<1x128xf32> to vector<256x128xf32>
      %40 = arith.mulf %37, %39 : vector<256x128xf32>
      %41 = arith.addf %35, %40 : vector<256x128xf32>
      %c17 = arith.constant 17 : index
      %c0_30 = arith.constant 0 : index
      %42 = vector.load %arg11[%c17, %c0_30] : memref<288x128xbf16, #tpu.memory_space<vmem>>, vector<256x128xbf16>
      %43 = arith.extf %42 : vector<256x128xbf16> to vector<256x128xf32>
      %44 = vector.extract_strided_slice %30 {offsets = [2, 0], sizes = [1, 128], strides = [1, 1]} : vector<3x128xf32> to vector<1x128xf32>
      %45 = vector.broadcast %44 : vector<1x128xf32> to vector<256x128xf32>
      %46 = arith.mulf %43, %45 : vector<256x128xf32>
      %47 = arith.addf %41, %46 : vector<256x128xf32>
      %c0_31 = arith.constant 0 : index
      %c0_32 = arith.constant 0 : index
      %48 = vector.load %arg7[%c0_31, %c0_32] : memref<1x128xf32, #tpu.memory_space<vmem>>, vector<1x128xf32>
      %49 = vector.broadcast %48 : vector<1x128xf32> to vector<256x128xf32>
      %50 = arith.addf %47, %49 : vector<256x128xf32>
      %51 = arith.truncf %50 : vector<256x128xf32> to vector<256x128xbf16>
      %c0_33 = arith.constant 0 : index
      %c0_34 = arith.constant 0 : index
      %52 = vector.load %arg12[%c0_33, %c0_34] : memref<256x128xbf16, #tpu.memory_space<vmem>>, vector<256x128xbf16>
      tpu.vector_store %arg12[%c0_33, %c0_34], %51 {strides = array<i32>} : memref<256x128xbf16, #tpu.memory_space<vmem>>, vector<256x128xbf16>,
    } else {
    }
    %c0 = arith.constant 0 : index
    %c0_1 = arith.constant 0 : index
    %3 = vector.load %arg12[%c0, %c0_1] : memref<256x128xbf16, #tpu.memory_space<vmem>>, vector<256x128xbf16>
    %c0_2 = arith.constant 0 : index
    %c0_3 = arith.constant 0 : index
    %4 = vector.load %arg8[%c0_2, %c0_3] : memref<128x128xbf16, #tpu.memory_space<vmem>>, vector<128x128xbf16>
    %cst = arith.constant dense<0.000000e+00> : vector<256x128xf32>
    %5 = tpu.matmul %3, %4, %cst {dimension_numbers = #tpu.dot_dimension_numbers<[1], [0], [0], [1], [0, 0, 1, 1], [], []>} : vector<256x128xbf16>, vector<128x128xbf16>, vector<256x128xf32> -> vector<256x128xf32>
    %c0_4 = arith.constant 0 : index
    %c0_5 = arith.constant 0 : index
    %6 = vector.load %arg9[%c0_4, %c0_5] : memref<1x128xf32, #tpu.memory_space<vmem>>, vector<1x128xf32>
    %7 = vector.broadcast %6 : vector<1x128xf32> to vector<256x128xf32>
    %8 = arith.addf %5, %7 : vector<256x128xf32>
    %c0_6 = arith.constant 0 : index
    %c0_7 = arith.constant 0 : index
    %c0_8 = arith.constant 0 : index
    %9 = vector.load %arg10[%c0_6, %c0_7, %c0_8] : memref<1x256x128xf32, #tpu.memory_space<vmem>>, vector<1x256x128xf32>
    %10 = vector.shape_cast %9 : vector<1x256x128xf32> to vector<256x128xf32>
    %11 = vector.shape_cast %8 : vector<256x128xf32> to vector<1x256x128xf32>
    tpu.vector_store %arg10[%c0_6, %c0_7, %c0_8], %11 {strides = array<i32>} : memref<1x256x128xf32, #tpu.memory_space<vmem>>, vector<1x256x128xf32>,
    return
  }
  func.func @transform_0(%arg0: i32, %arg1: i32, %arg2: i32) -> (i32, i32, i32) {
    %c1_i32 = arith.constant 1 : i32
    %0 = arith.minsi %arg1, %c1_i32 : i32
    %c0_i32 = arith.constant 0 : i32
    %c0_i32_0 = arith.constant 0 : i32
    return %arg0, %0, %c0_i32 : i32, i32, i32
  }
  func.func @transform_1(%arg0: i32, %arg1: i32, %arg2: i32) -> (i32, i32, i32) {
    %c16_i32 = arith.constant 16 : i32
    %0 = arith.muli %arg1, %c16_i32 : i32
    %c1_i32 = arith.constant 1 : i32
    %1 = arith.subi %0, %c1_i32 : i32
    %c0_i32 = arith.constant 0 : i32
    %2 = arith.maxsi %1, %c0_i32 : i32
    %c0_i32_0 = arith.constant 0 : i32
    %c0_i32_1 = arith.constant 0 : i32
    return %arg0, %2, %c0_i32_0 : i32, i32, i32
  }
  func.func @transform_2(%arg0: i32, %arg1: i32, %arg2: i32) -> (i32, i32, i32) {
    %c1_i32 = arith.constant 1 : i32
    %0 = arith.addi %arg1, %c1_i32 : i32
    %c16_i32 = arith.constant 16 : i32
    %1 = arith.muli %0, %c16_i32 : i32
    %c18_i32 = arith.constant 18 : i32
    %2 = arith.minsi %1, %c18_i32 : i32
    %c0_i32 = arith.constant 0 : i32
    %c0_i32_0 = arith.constant 0 : i32
    return %arg0, %2, %c0_i32 : i32, i32, i32
  }
  func.func @transform_3(%arg0: i32, %arg1: i32, %arg2: i32) -> (i32, i32) {
    %c0_i32 = arith.constant 0 : i32
    %c0_i32_0 = arith.constant 0 : i32
    %c0_i32_1 = arith.constant 0 : i32
    return %c0_i32, %c0_i32_0 : i32, i32
  }
  func.func @transform_4(%arg0: i32, %arg1: i32, %arg2: i32) -> (i32, i32) {
    %c0_i32 = arith.constant 0 : i32
    %c0_i32_0 = arith.constant 0 : i32
    %c0_i32_1 = arith.constant 0 : i32
    return %c0_i32, %c0_i32_0 : i32, i32
  }
  func.func @transform_5(%arg0: i32, %arg1: i32, %arg2: i32) -> (i32, i32) {
    %c0_i32 = arith.constant 0 : i32
    %c0_i32_0 = arith.constant 0 : i32
    return %c0_i32, %arg2 : i32, i32
  }
  func.func @transform_6(%arg0: i32, %arg1: i32, %arg2: i32) -> (i32, i32) {
    %c0_i32 = arith.constant 0 : i32
    %c0_i32_0 = arith.constant 0 : i32
    return %c0_i32, %arg2 : i32, i32
  }
  func.func @transform_7(%arg0: i32, %arg1: i32, %arg2: i32) -> (i32, i32, i32) {
    %c0_i32 = arith.constant 0 : i32
    return %arg0, %arg1, %arg2 : i32, i32, i32
  }
}

</mosaic_0001>

<llo_original>
// kernel: tpu_custom_call.1
$region0: #{tpu_custom_call.1}
  #allocation0 [shape = 'u32[]', space=smem, size = 0x4, offset = 0x4, fixed_abs, tag = 'smem constant byte address 0x4 - core index']
  #allocation1 [shape = 'u32[144,128]{1,0:T(1,128)}', space=vmem, size = 0x12000, scoped, tag = 'internal scratch']
  #allocation2 [shape = 'bf16[288,128]{1,0:T(16,128)(2,1)}', space=vmem, size = 0x12000, scoped, tag = 'scratch operand']
  #allocation3 [shape = 'bf16[256,128]{1,0:T(16,128)(2,1)}', space=vmem, size = 0x10000, scoped, tag = 'scratch operand']
  %s0 = inlined_call_operand.vmem [shape: bf16[2,300,128], index: 0, kind: input, shape index: {}]
  %s1 = inlined_call_operand.vmem [shape: bf16[2,300,128], index: 1, kind: input, shape index: {}]
  %s2 = inlined_call_operand.vmem [shape: bf16[2,300,128], index: 2, kind: input, shape index: {}]
  %s3 = inlined_call_operand.vmem [shape: f32[3,128], index: 3, kind: input, shape index: {}]
  %s4 = inlined_call_operand.vmem [shape: f32[1,128], index: 4, kind: input, shape index: {}]
  %s5 = inlined_call_operand.vmem [shape: bf16[128,128], index: 5, kind: input, shape index: {}]
  %s6 = inlined_call_operand.vmem [shape: f32[1,128], index: 6, kind: input, shape index: {}]
  %s7 = inlined_call_operand.vmem [shape: f32[2,300,128], index: 7, kind: output, shape index: {}]
  %s8 = sld [smem:[#allocation0]]
  $region121: #{tpu_custom_call.1} parent=0
    _
  %s10 = ssub.s32 1, %s8
  %s11 = scalar_select 0, %s10, %s8
  $region1: #{tpu_custom_call.1} parent=0
    #allocation4 [shape = 'u8[262144]{0}', space=vmem, size = 0x40000, scoped, tag = 'output window, operand 0']
    loop: start=0, step=1, limit=6
    $region2: #{tpu_custom_call.1} parent=1 // loop_pre_header
      _
    $region3: #{tpu_custom_call.1} parent=1 // loop_header
      %s13 = sphi 0, %s17
      %p14 = scmp.ge.s32.totalorder %s13, 6
      %s20 = sphi 0, %s39
      %s21 = sphi 0, %s35
      %s22 = sphi 0, %s31
      %s23 = sphi 0, %s20
      %s24 = sphi 0, %s21
      %s25 = sphi 0, %s22
      %s26 = sphi 0, %s23
      %s27 = sphi 0, %s24
      %s28 = sphi 0, %s25
      %s48 = sphi 0, %s50
      %s51 = sphi 0, %s48
      %s52 = sphi 0, %s51
      %s68 = sphi 0, %s52
      %s84 = sphi 0, %s86
      %s87 = sphi 0, %s84
      %s88 = sphi 0, %s87
      %s104 = sphi 0, %s88
      %s120 = sphi 0, %s122
      %s123 = sphi 0, %s120
      %s124 = sphi 0, %s123
      %s140 = sphi 0, %s124
      %s144 = sphi 0, %s144
      %s146 = sphi 0, %s144
      %s147 = sphi 0, %s146
      %s161 = sphi 0, %s147
      %s165 = sphi 0, %s165
      %s167 = sphi 0, %s165
      %s168 = sphi 0, %s167
      %s182 = sphi 0, %s168
      %s188 = sphi 0, %s190
      %s191 = sphi 0, %s188
      %s192 = sphi 0, %s191
      %s208 = sphi 0, %s192
      %s214 = sphi 0, %s216
      %s217 = sphi 0, %s214
      %s218 = sphi 0, %s217
      %s234 = sphi 0, %s218
      %s244 = sphi 0, %s246
      %s247 = sphi 0, %s244
      %s248 = sphi 0, %s247
      %s264 = sphi 0, %s248
    $region4: #{tpu_custom_call.1} parent=1 // loop_header_branch
      %16 = sbr.rel (%p14) target = $region8
    $region5: #{tpu_custom_call.1} parent=1 // loop_body
      %s18 = ssub.s32 %s13, 1
      %s19 = ssub.s32 %s13, 2
      %s29 = sadd.s32 1, %s22
      %p30 = scmp.ge.s32.totalorder %s29, 1
      %s31 = scalar_select %p30, 0, %s29
      %s32 = sadd.s32 1, %s21
      %s33 = scalar_select %p30, %s32, %s21
      %p34 = scmp.ge.s32.totalorder %s33, 2
      %s35 = scalar_select %p34, 0, %s33
      %s36 = sadd.s32 1, %s20
      %s37 = scalar_select %p34, %s36, %s20
      %p38 = scmp.ge.s32.totalorder %s37, 2
      %s39 = scalar_select %p38, 0, %s37
      %p40 = scmp.lt.s32.totalorder %s21, 1
      %s41 = scalar_select %p40, %s21, 1
      %p42 = scmp.lt.s32.totalorder %s35, 1
      %s43 = scalar_select %p42, %s35, 1
      %s44 = ssub.s32 %s20, %s39
      %s45 = ssub.s32 %s41, %s43
      %s46 = sor.u32 %s44, %s45
      %p47 = scmp.eq.s32.totalorder %s46, 0
      %s49 = sadd.s32 %s48, 1
      %s50 = scalar_select %p47, %s48, %s49
      %p53 = pneg %p47
      %p54 = scmp.eq.s32.totalorder %s13, 3
      %p55 = por %p53, %p54
      %p56 = scmp.ne.s32.totalorder %s48, %s51
      %p57 = scmp.eq.s32.totalorder %s13, 0
      %p58 = por %p56, %p57
      %p59 = scmp.ne.s32.totalorder %s48, %s51
      %p60 = scmp.eq.s32.totalorder %s18, 3
      %p61 = por %p59, %p60
      %p62 = scmp.ne.s32.totalorder %s51, %s52
      %p63 = scmp.eq.s32.totalorder %s18, 0
      %p64 = por %p62, %p63
      %p65 = scmp.ne.s32.totalorder %s51, %s52
      %p66 = scmp.eq.s32.totalorder %s19, 3
      %p67 = por %p65, %p66
      %p69 = scmp.ne.s32.totalorder %s52, %s68
      %p70 = scmp.eq.s32.totalorder %s19, 0
      %p71 = por %p69, %p70
      %s72 = smul.u32 %s21, 16
      %s73 = ssub.s32 %s72, 1
      %p74 = scmp.gt.s32.totalorder %s73, 0
      %s75 = scalar_select %p74, %s73, 0
      %s76 = smul.u32 %s35, 16
      %s77 = ssub.s32 %s76, 1
      %p78 = scmp.gt.s32.totalorder %s77, 0
      %s79 = scalar_select %p78, %s77, 0
      %s80 = ssub.s32 %s20, %s39
      %s81 = ssub.s32 %s75, %s79
      %s82 = sor.u32 %s80, %s81
      %p83 = scmp.eq.s32.totalorder %s82, 0
      %s85 = sadd.s32 %s84, 1
      %s86 = scalar_select %p83, %s84, %s85
      %p89 = pneg %p83
      %p90 = scmp.eq.s32.totalorder %s13, 3
      %p91 = por %p89, %p90
      %p92 = scmp.ne.s32.totalorder %s84, %s87
      %p93 = scmp.eq.s32.totalorder %s13, 0
      %p94 = por %p92, %p93
      %p95 = scmp.ne.s32.totalorder %s84, %s87
      %p96 = scmp.eq.s32.totalorder %s18, 3
      %p97 = por %p95, %p96
      %p98 = scmp.ne.s32.totalorder %s87, %s88
      %p99 = scmp.eq.s32.totalorder %s18, 0
      %p100 = por %p98, %p99
      %p101 = scmp.ne.s32.totalorder %s87, %s88
      %p102 = scmp.eq.s32.totalorder %s19, 3
      %p103 = por %p101, %p102
      %p105 = scmp.ne.s32.totalorder %s88, %s104
      %p106 = scmp.eq.s32.totalorder %s19, 0
      %p107 = por %p105, %p106
      %s108 = sadd.s32 %s21, 1
      %s109 = smul.u32 %s108, 16
      %p110 = scmp.lt.s32.totalorder %s109, 18
      %s111 = scalar_select %p110, %s109, 18
      %s112 = sadd.s32 %s35, 1
      %s113 = smul.u32 %s112, 16
      %p114 = scmp.lt.s32.totalorder %s113, 18
      %s115 = scalar_select %p114, %s113, 18
      %s116 = ssub.s32 %s20, %s39
      %s117 = ssub.s32 %s111, %s115
      %s118 = sor.u32 %s116, %s117
      %p119 = scmp.eq.s32.totalorder %s118, 0
      %s121 = sadd.s32 %s120, 1
      %s122 = scalar_select %p119, %s120, %s121
      %p125 = pneg %p119
      %p126 = scmp.eq.s32.totalorder %s13, 3
      %p127 = por %p125, %p126
      %p128 = scmp.ne.s32.totalorder %s120, %s123
      %p129 = scmp.eq.s32.totalorder %s13, 0
      %p130 = por %p128, %p129
      %p131 = scmp.ne.s32.totalorder %s120, %s123
      %p132 = scmp.eq.s32.totalorder %s18, 3
      %p133 = por %p131, %p132
      %p134 = scmp.ne.s32.totalorder %s123, %s124
      %p135 = scmp.eq.s32.totalorder %s18, 0
      %p136 = por %p134, %p135
      %p137 = scmp.ne.s32.totalorder %s123, %s124
      %p138 = scmp.eq.s32.totalorder %s19, 3
      %p139 = por %p137, %p138
      %p141 = scmp.ne.s32.totalorder %s124, %s140
      %p142 = scmp.eq.s32.totalorder %s19, 0
      %p143 = por %p141, %p142
      %s145 = sadd.s32 %s144, 1
      %p148 = scmp.eq.s32.totalorder %s13, 3
      %p149 = scmp.ne.s32.totalorder %s144, %s146
      %p150 = scmp.eq.s32.totalorder %s13, 0
      %p151 = por %p149, %p150
      %p152 = scmp.ne.s32.totalorder %s144, %s146
      %p153 = scmp.eq.s32.totalorder %s18, 3
      %p154 = por %p152, %p153
      %p155 = scmp.ne.s32.totalorder %s146, %s147
      %p156 = scmp.eq.s32.totalorder %s18, 0
      %p157 = por %p155, %p156
      %p158 = scmp.ne.s32.totalorder %s146, %s147
      %p159 = scmp.eq.s32.totalorder %s19, 3
      %p160 = por %p158, %p159
      %p162 = scmp.ne.s32.totalorder %s147, %s161
      %p163 = scmp.eq.s32.totalorder %s19, 0
      %p164 = por %p162, %p163
      %s166 = sadd.s32 %s165, 1
      %p169 = scmp.eq.s32.totalorder %s13, 3
      %p170 = scmp.ne.s32.totalorder %s165, %s167
      %p171 = scmp.eq.s32.totalorder %s13, 0
      %p172 = por %p170, %p171
      %p173 = scmp.ne.s32.totalorder %s165, %s167
      %p174 = scmp.eq.s32.totalorder %s18, 3
      %p175 = por %p173, %p174
      %p176 = scmp.ne.s32.totalorder %s167, %s168
      %p177 = scmp.eq.s32.totalorder %s18, 0
      %p178 = por %p176, %p177
      %p179 = scmp.ne.s32.totalorder %s167, %s168
      %p180 = scmp.eq.s32.totalorder %s19, 3
      %p181 = por %p179, %p180
      %p183 = scmp.ne.s32.totalorder %s168, %s182
      %p184 = scmp.eq.s32.totalorder %s19, 0
      %p185 = por %p183, %p184
      %s186 = ssub.s32 %s22, %s31
      %p187 = scmp.eq.s32.totalorder %s186, 0
      %s189 = sadd.s32 %s188, 1
      %s190 = scalar_select %p187, %s188, %s189
      %p193 = pneg %p187
      %p194 = scmp.eq.s32.totalorder %s13, 3
      %p195 = por %p193, %p194
      %p196 = scmp.ne.s32.totalorder %s188, %s191
      %p197 = scmp.eq.s32.totalorder %s13, 0
      %p198 = por %p196, %p197
      %p199 = scmp.ne.s32.totalorder %s188, %s191
      %p200 = scmp.eq.s32.totalorder %s18, 3
      %p201 = por %p199, %p200
      %p202 = scmp.ne.s32.totalorder %s191, %s192
      %p203 = scmp.eq.s32.totalorder %s18, 0
      %p204 = por %p202, %p203
      %p205 = scmp.ne.s32.totalorder %s191, %s192
      %p206 = scmp.eq.s32.totalorder %s19, 3
      %p207 = por %p205, %p206
      %p209 = scmp.ne.s32.totalorder %s192, %s208
      %p210 = scmp.eq.s32.totalorder %s19, 0
      %p211 = por %p209, %p210
      %s212 = ssub.s32 %s22, %s31
      %p213 = scmp.eq.s32.totalorder %s212, 0
      %s215 = sadd.s32 %s214, 1
      %s216 = scalar_select %p213, %s214, %s215
      %p219 = pneg %p213
      %p220 = scmp.eq.s32.totalorder %s13, 3
      %p221 = por %p219, %p220
      %p222 = scmp.ne.s32.totalorder %s214, %s217
      %p223 = scmp.eq.s32.totalorder %s13, 0
      %p224 = por %p222, %p223
      %p225 = scmp.ne.s32.totalorder %s214, %s217
      %p226 = scmp.eq.s32.totalorder %s18, 3
      %p227 = por %p225, %p226
      %p228 = scmp.ne.s32.totalorder %s217, %s218
      %p229 = scmp.eq.s32.totalorder %s18, 0
      %p230 = por %p228, %p229
      %p231 = scmp.ne.s32.totalorder %s217, %s218
      %p232 = scmp.eq.s32.totalorder %s19, 3
      %p233 = por %p231, %p232
      %p235 = scmp.ne.s32.totalorder %s218, %s234
      %p236 = scmp.eq.s32.totalorder %s19, 0
      %p237 = por %p235, %p236
      %s238 = ssub.s32 %s20, %s39
      %s239 = ssub.s32 %s21, %s35
      %s240 = sor.u32 %s238, %s239
      %s241 = ssub.s32 %s22, %s31
      %s242 = sor.u32 %s240, %s241
      %p243 = scmp.eq.s32.totalorder %s242, 0
      %s245 = sadd.s32 %s244, 1
      %s246 = scalar_select %p243, %s244, %s245
      %p249 = pneg %p243
      %p250 = scmp.eq.s32.totalorder %s13, 3
      %p251 = por %p249, %p250
      %p252 = scmp.ne.s32.totalorder %s244, %s247
      %p253 = scmp.eq.s32.totalorder %s13, 0
      %p254 = por %p252, %p253
      %p255 = scmp.ne.s32.totalorder %s244, %s247
      %p256 = scmp.eq.s32.totalorder %s18, 3
      %p257 = por %p255, %p256
      %p258 = scmp.ne.s32.totalorder %s247, %s248
      %p259 = scmp.eq.s32.totalorder %s18, 0
      %p260 = por %p258, %p259
      %p261 = scmp.ne.s32.totalorder %s247, %s248
      %p262 = scmp.eq.s32.totalorder %s19, 3
      %p263 = por %p261, %p262
      %p265 = scmp.ne.s32.totalorder %s248, %s264
      %p266 = scmp.eq.s32.totalorder %s19, 0
      %p267 = por %p265, %p266
      %p268 = scmp.le.s32.totalorder 1, %s13
      %p269 = scmp.lt.s32.totalorder %s13, 5
      %p270 = pnand %p268, %p269
      %p271 = pneg %p270
      // Predicated region
      $region9: #{tpu_custom_call.1} parent=5 // pred_check
        _
      $region10: #{tpu_custom_call.1} parent=5 // pred_check_branch
        %273 = sbr.rel (%p270) target = $region12
      $region11: #{tpu_custom_call.1} parent=5 // pred_region
        %s274 = ssub.s32 %s13, 1
        // Predicated region
        $region13: #{tpu_custom_call.1} parent=11 // pred_check
          %p275 = pneg %p157
        $region14: #{tpu_custom_call.1} parent=11 // pred_check_branch
          %277 = sbr.rel (%p275) target = $region16
        $region15: #{tpu_custom_call.1} parent=11 // pred_region
          _
        $region16: #{tpu_custom_call.1} parent=11 // pred_fallthru
          _
        // Predicated region
        $region17: #{tpu_custom_call.1} parent=11 // pred_check
          %p278 = pneg %p178
        $region18: #{tpu_custom_call.1} parent=11 // pred_check_branch
          %280 = sbr.rel (%p278) target = $region20
        $region19: #{tpu_custom_call.1} parent=11 // pred_region
          _
        $region20: #{tpu_custom_call.1} parent=11 // pred_fallthru
          _
        // Predicated region
        $region21: #{tpu_custom_call.1} parent=11 // pred_check
          %p281 = pneg %p204
        $region22: #{tpu_custom_call.1} parent=11 // pred_check_branch
          %283 = sbr.rel (%p281) target = $region24
        $region23: #{tpu_custom_call.1} parent=11 // pred_region
          %p284 = scmp.lt.s32.totalorder %s25, 0
          %s285 = scalar_select %p284, %s25, 0
          %s286 = smul.addr %s285, 4
          %s287 = scalar_lea.vmem %s5, %s286
        $region24: #{tpu_custom_call.1} parent=11 // pred_fallthru
          _
        // Predicated region
        $region25: #{tpu_custom_call.1} parent=11 // pred_check
          %p288 = pneg %p230
        $region26: #{tpu_custom_call.1} parent=11 // pred_check_branch
          %290 = sbr.rel (%p288) target = $region28
        $region27: #{tpu_custom_call.1} parent=11 // pred_region
          %p291 = scmp.lt.s32.totalorder %s25, 0
          %s292 = scalar_select %p291, %s25, 0
          %s293 = scalar_lea.vmem %s6, %s292
        $region28: #{tpu_custom_call.1} parent=11 // pred_fallthru
          _
      $region12: #{tpu_custom_call.1} parent=5 // pred_fallthru
        _
      %p294 = scmp.lt.s32.totalorder %s13, 4
      // Predicated region
      $region29: #{tpu_custom_call.1} parent=5 // pred_check
        %p295 = pneg %p294
      $region30: #{tpu_custom_call.1} parent=5 // pred_check_branch
        %297 = sbr.rel (%p295) target = $region32
      $region31: #{tpu_custom_call.1} parent=5 // pred_region
        // Predicated region
        $region33: #{tpu_custom_call.1} parent=31 // pred_check
          %p298 = pneg %p58
        $region34: #{tpu_custom_call.1} parent=31 // pred_check_branch
          %300 = sbr.rel (%p298) target = $region36
        $region35: #{tpu_custom_call.1} parent=31 // pred_region
          %p301 = scmp.lt.s32.totalorder %s21, 1
          %s302 = scalar_select %p301, %s21, 1
          %s303 = smul.u32 32, %s302
          %s304 = ssub.s32 38, %s303
          %p305 = scmp.lt.s32.totalorder %s304, 32
          %s306 = scalar_select %p305, %s304, 32
          %s307 = smul.u32 64, %s306
          %p308 = scmp.lt.s32.totalorder %s20, 1
          %s309 = scalar_select %p308, %s20, 1
          %p310 = scmp.lt.s32.totalorder %s303, 37
          %s311 = scalar_select %p310, %s303, 37
          %s312 = smul.addr %s309, 38
          %s313 = sadd.s32 %s311, %s312
          %s314 = smul.addr %s313, 4
          %s315 = scalar_lea.vmem %s0, %s314
          %p316 = scmp.lt.s32.totalorder %s21, 1
          %s317 = scalar_select %p316, %s21, 1
          %s318 = smul.u32 32, %s317
          %s319 = ssub.s32 38, %s318
          %p320 = scmp.lt.s32.totalorder %s319, 32
          %s321 = scalar_select %p320, %s319, 32
          %s322 = smul.u32 64, %s321
        $region36: #{tpu_custom_call.1} parent=31 // pred_fallthru
          _
        // Predicated region
        $region37: #{tpu_custom_call.1} parent=31 // pred_check
          %p323 = pneg %p94
        $region38: #{tpu_custom_call.1} parent=31 // pred_check_branch
          %325 = sbr.rel (%p323) target = $region40
        $region39: #{tpu_custom_call.1} parent=31 // pred_region
          %s326 = smul.u32 %s21, 16
          %s327 = ssub.s32 %s326, 1
          %p328 = scmp.gt.s32.totalorder %s327, 0
          %s329 = scalar_select %p328, %s327, 0
          %s330 = smul.u32 2, %s329
          %p331 = scmp.lt.s32.totalorder %s20, 1
          %s332 = scalar_select %p331, %s20, 1
          %p333 = scmp.lt.s32.totalorder %s330, 37
          %s334 = scalar_select %p333, %s330, 37
          %s335 = smul.addr %s332, 38
          %s336 = sadd.s32 %s334, %s335
          %s337 = smul.addr %s336, 4
          %s338 = scalar_lea.vmem %s1, %s337
          %s339 = smul.u32 %s21, 16
          %s340 = ssub.s32 %s339, 1
          %p341 = scmp.gt.s32.totalorder %s340, 0
          %s342 = scalar_select %p341, %s340, 0
          %s343 = smul.u32 2, %s342
        $region40: #{tpu_custom_call.1} parent=31 // pred_fallthru
          _
        // Predicated region
        $region41: #{tpu_custom_call.1} parent=31 // pred_check
          %p344 = pneg %p130
        $region42: #{tpu_custom_call.1} parent=31 // pred_check_branch
          %346 = sbr.rel (%p344) target = $region44
        $region43: #{tpu_custom_call.1} parent=31 // pred_region
          %s347 = sadd.s32 %s21, 1
          %s348 = smul.u32 %s347, 16
          %p349 = scmp.lt.s32.totalorder %s348, 18
          %s350 = scalar_select %p349, %s348, 18
          %s351 = smul.u32 2, %s350
          %p352 = scmp.lt.s32.totalorder %s20, 1
          %s353 = scalar_select %p352, %s20, 1
          %p354 = scmp.lt.s32.totalorder %s351, 37
          %s355 = scalar_select %p354, %s351, 37
          %s356 = smul.addr %s353, 38
          %s357 = sadd.s32 %s355, %s356
          %s358 = smul.addr %s357, 4
          %s359 = scalar_lea.vmem %s2, %s358
          %s360 = sadd.s32 %s21, 1
          %s361 = smul.u32 %s360, 16
          %p362 = scmp.lt.s32.totalorder %s361, 18
          %s363 = scalar_select %p362, %s361, 18
          %s364 = smul.u32 2, %s363
        $region44: #{tpu_custom_call.1} parent=31 // pred_fallthru
          _
      $region32: #{tpu_custom_call.1} parent=5 // pred_fallthru
        _
      %p365 = scmp.le.s32.totalorder 1, %s13
      %p366 = scmp.lt.s32.totalorder %s13, 5
      %p367 = pnand %p365, %p366
      %p368 = pneg %p367
      // Predicated region
      $region45: #{tpu_custom_call.1} parent=5 // pred_check
        _
      $region46: #{tpu_custom_call.1} parent=5 // pred_check_branch
        %370 = sbr.rel (%p367) target = $region48
      $region47: #{tpu_custom_call.1} parent=5 // pred_region
        %s371 = ssub.s32 %s13, 1
        %p372 = scmp.lt.s32.totalorder %s24, 1
        %s373 = scalar_select %p372, %s24, 1
        %s374 = smul.u32 32, %s373
        %s375 = ssub.s32 38, %s374
        %p376 = scmp.lt.s32.totalorder %s375, 32
        %s377 = scalar_select %p376, %s375, 32
        %s378 = smul.u32 64, %s377
        %p379 = scmp.lt.s32.totalorder %s23, 1
        %s380 = scalar_select %p379, %s23, 1
        %p381 = scmp.lt.s32.totalorder %s374, 37
        %s382 = scalar_select %p381, %s374, 37
        %s383 = smul.addr %s380, 38
        %s384 = sadd.s32 %s382, %s383
        %s385 = smul.addr %s384, 4
        %s386 = scalar_lea.vmem %s0, %s385
        %p387 = pneg %p64
        %p388 = pneg %p61
        %s389 = smul.u32 %s24, 16
        %s390 = ssub.s32 %s389, 1
        %p391 = scmp.gt.s32.totalorder %s390, 0
        %s392 = scalar_select %p391, %s390, 0
        %s393 = smul.u32 2, %s392
        %p394 = scmp.lt.s32.totalorder %s23, 1
        %s395 = scalar_select %p394, %s23, 1
        %p396 = scmp.lt.s32.totalorder %s393, 37
        %s397 = scalar_select %p396, %s393, 37
        %s398 = smul.addr %s395, 38
        %s399 = sadd.s32 %s397, %s398
        %s400 = smul.addr %s399, 4
        %s401 = scalar_lea.vmem %s1, %s400
        %p402 = pneg %p100
        %p403 = pneg %p97
        %s404 = sadd.s32 %s24, 1
        %s405 = smul.u32 %s404, 16
        %p406 = scmp.lt.s32.totalorder %s405, 18
        %s407 = scalar_select %p406, %s405, 18
        %s408 = smul.u32 2, %s407
        %p409 = scmp.lt.s32.totalorder %s23, 1
        %s410 = scalar_select %p409, %s23, 1
        %p411 = scmp.lt.s32.totalorder %s408, 37
        %s412 = scalar_select %p411, %s408, 37
        %s413 = smul.addr %s410, 38
        %s414 = sadd.s32 %s412, %s413
        %s415 = smul.addr %s414, 4
        %s416 = scalar_lea.vmem %s2, %s415
        %p417 = pneg %p136
        %p418 = pneg %p133
        %p419 = pneg %p157
        %p420 = pneg %p154
        %p421 = pneg %p178
        %p422 = pneg %p175
        %p423 = scmp.lt.s32.totalorder %s25, 0
        %s424 = scalar_select %p423, %s25, 0
        %s425 = smul.addr %s424, 4
        %s426 = scalar_lea.vmem %s5, %s425
        %p427 = pneg %p204
        %p428 = pneg %p201
        %p429 = scmp.lt.s32.totalorder %s25, 0
        %s430 = scalar_select %p429, %s25, 0
        %s431 = scalar_lea.vmem %s6, %s430
        %p432 = pneg %p230
        %p433 = pneg %p227
        %p434 = pneg %p260
        %p435 = pneg %p257
        %s436 = sand.u32 %s247, 1
        %s437 = sand.u32 %s247, 1
        %s438 = smul.addr %s437, 256
        %s439 = scalar_lea.vmem [#allocation4], %s438
        %p440 = scmp.lt.s32.totalorder %s24, 1
        %s441 = scalar_select %p440, %s24, 1
        %s442 = smul.u32 32, %s441
        %s443 = ssub.s32 38, %s442
        %p444 = scmp.lt.s32.totalorder %s443, 32
        %s445 = scalar_select %p444, %s443, 32
        %s446 = smul.u32 64, %s445
        %p447 = scmp.lt.s32.totalorder %s23, 1
        %s448 = scalar_select %p447, %s23, 1
        %p449 = scmp.lt.s32.totalorder %s442, 37
        %s450 = scalar_select %p449, %s442, 37
        %s451 = smul.addr %s448, 38
        %s452 = sadd.s32 %s450, %s451
        %s453 = smul.addr %s452, 4
        %s454 = scalar_lea.vmem %s0, %s453
        %p455 = scmp.lt.s32.totalorder %s24, 1
        %s456 = scalar_select %p455, %s24, 1
        %s457 = smul.u32 32, %s456
        %s458 = ssub.s32 38, %s457
        %p459 = scmp.lt.s32.totalorder %s458, 32
        %s460 = scalar_select %p459, %s458, 32
        %s461 = smul.u32 64, %s460
        %s462 = smul.u32 %s24, 16
        %s463 = ssub.s32 %s462, 1
        %p464 = scmp.gt.s32.totalorder %s463, 0
        %s465 = scalar_select %p464, %s463, 0
        %s466 = smul.u32 2, %s465
        %p467 = scmp.lt.s32.totalorder %s23, 1
        %s468 = scalar_select %p467, %s23, 1
        %p469 = scmp.lt.s32.totalorder %s466, 37
        %s470 = scalar_select %p469, %s466, 37
        %s471 = smul.addr %s468, 38
        %s472 = sadd.s32 %s470, %s471
        %s473 = smul.addr %s472, 4
        %s474 = scalar_lea.vmem %s1, %s473
        %s475 = smul.u32 %s24, 16
        %s476 = ssub.s32 %s475, 1
        %p477 = scmp.gt.s32.totalorder %s476, 0
        %s478 = scalar_select %p477, %s476, 0
        %s479 = smul.u32 2, %s478
        %s480 = sadd.s32 %s24, 1
        %s481 = smul.u32 %s480, 16
        %p482 = scmp.lt.s32.totalorder %s481, 18
        %s483 = scalar_select %p482, %s481, 18
        %s484 = smul.u32 2, %s483
        %p485 = scmp.lt.s32.totalorder %s23, 1
        %s486 = scalar_select %p485, %s23, 1
        %p487 = scmp.lt.s32.totalorder %s484, 37
        %s488 = scalar_select %p487, %s484, 37
        %s489 = smul.addr %s486, 38
        %s490 = sadd.s32 %s488, %s489
        %s491 = smul.addr %s490, 4
        %s492 = scalar_lea.vmem %s2, %s491
        %s493 = sadd.s32 %s24, 1
        %s494 = smul.u32 %s493, 16
        %p495 = scmp.lt.s32.totalorder %s494, 18
        %s496 = scalar_select %p495, %s494, 18
        %s497 = smul.u32 2, %s496
        %p498 = scmp.lt.s32.totalorder %s25, 0
        %s499 = scalar_select %p498, %s25, 0
        %s500 = smul.addr %s499, 4
        %s501 = scalar_lea.vmem %s5, %s500
        %p502 = scmp.lt.s32.totalorder %s25, 0
        %s503 = scalar_select %p502, %s25, 0
        %s504 = scalar_lea.vmem %s6, %s503
        %s505 = smul.u32 32, %s24
        %s506 = ssub.s32 38, %s505
        %p507 = scmp.lt.s32.totalorder %s506, 32
        %s508 = scalar_select %p507, %s506, 32
        %s509 = smul.u32 128, %s508
        %p513 = scmp.eq.s32.totalorder %s25, 0
        // Predicated region
        $region49: #{tpu_custom_call.1} parent=47 // pred_check
          %p514 = pneg %p513
        $region50: #{tpu_custom_call.1} parent=47 // pred_check_branch
          %516 = sbr.rel (%p514) target = $region52
        $region51: #{tpu_custom_call.1} parent=47 // pred_region
          %v517 = vld [vmem:[%s474] sm:$0xf]
          %v518 = vld [vmem:[%s474 + $0x4] sm:$0xf]
          %v521 = vunpack.c.l.b16 %v517
          %v522 = vunpack.c.l.b16 %v518
          %v523 = vpack.c.b16 %v522, %v521
          %525 = vst [vmem:[#allocation2] sm:$0xff] %v523
          %v526 = vld [vmem:[%s454] sm:$0xf]
          %v527 = vld [vmem:[%s454 + $0x4] sm:$0xf]
          %v528 = vld [vmem:[%s454 + $0x8] sm:$0xf]
          %v529 = vld [vmem:[%s454 + $0xc] sm:$0xf]
          %v530 = vld [vmem:[%s454 + $0x10] sm:$0xf]
          %v531 = vld [vmem:[%s454 + $0x14] sm:$0xf]
          %v532 = vld [vmem:[%s454 + $0x18] sm:$0xf]
          %v533 = vld [vmem:[%s454 + $0x1c] sm:$0xf]
          %v534 = vld [vmem:[%s454 + $0x20] sm:$0xf]
          %v535 = vld [vmem:[%s454 + $0x24] sm:$0xf]
          %v536 = vld [vmem:[%s454 + $0x28] sm:$0xf]
          %v537 = vld [vmem:[%s454 + $0x2c] sm:$0xf]
          %v538 = vld [vmem:[%s454 + $0x30] sm:$0xf]
          %v539 = vld [vmem:[%s454 + $0x34] sm:$0xf]
          %v540 = vld [vmem:[%s454 + $0x38] sm:$0xf]
          %v541 = vld [vmem:[%s454 + $0x3c] sm:$0xf]
          %v542 = vld [vmem:[%s454 + $0x40] sm:$0xf]
          %v543 = vld [vmem:[%s454 + $0x44] sm:$0xf]
          %v544 = vld [vmem:[%s454 + $0x48] sm:$0xf]
          %v545 = vld [vmem:[%s454 + $0x4c] sm:$0xf]
          %v546 = vld [vmem:[%s454 + $0x50] sm:$0xf]
          %v547 = vld [vmem:[%s454 + $0x54] sm:$0xf]
          %v548 = vld [vmem:[%s454 + $0x58] sm:$0xf]
          %v549 = vld [vmem:[%s454 + $0x5c] sm:$0xf]
          %v550 = vld [vmem:[%s454 + $0x60] sm:$0xf]
          %v551 = vld [vmem:[%s454 + $0x64] sm:$0xf]
          %v552 = vld [vmem:[%s454 + $0x68] sm:$0xf]
          %v553 = vld [vmem:[%s454 + $0x6c] sm:$0xf]
          %v554 = vld [vmem:[%s454 + $0x70] sm:$0xf]
          %v555 = vld [vmem:[%s454 + $0x74] sm:$0xf]
          %v556 = vld [vmem:[%s454 + $0x78] sm:$0xf]
          %v557 = vld [vmem:[%s454 + $0x7c] sm:$0xf]
          %v590 = vunpack.c.l.b16 %v526
          %v591 = vunpack.c.l.b16 %v527
          %v592 = vunpack.c.l.b16 %v528
          %v593 = vunpack.c.l.b16 %v529
          %v594 = vunpack.c.l.b16 %v530
          %v595 = vunpack.c.l.b16 %v531
          %v596 = vunpack.c.l.b16 %v532
          %v597 = vunpack.c.l.b16 %v533
          %v598 = vunpack.c.l.b16 %v534
          %v599 = vunpack.c.l.b16 %v535
          %v600 = vunpack.c.l.b16 %v536
          %v601 = vunpack.c.l.b16 %v537
          %v602 = vunpack.c.l.b16 %v538
          %v603 = vunpack.c.l.b16 %v539
          %v604 = vunpack.c.l.b16 %v540
          %v605 = vunpack.c.l.b16 %v541
          %v606 = vunpack.c.l.b16 %v542
          %v607 = vunpack.c.l.b16 %v543
          %v608 = vunpack.c.l.b16 %v544
          %v609 = vunpack.c.l.b16 %v545
          %v610 = vunpack.c.l.b16 %v546
          %v611 = vunpack.c.l.b16 %v547
          %v612 = vunpack.c.l.b16 %v548
          %v613 = vunpack.c.l.b16 %v549
          %v614 = vunpack.c.l.b16 %v550
          %v615 = vunpack.c.l.b16 %v551
          %v616 = vunpack.c.l.b16 %v552
          %v617 = vunpack.c.l.b16 %v553
          %v618 = vunpack.c.l.b16 %v554
          %v619 = vunpack.c.l.b16 %v555
          %v620 = vunpack.c.l.b16 %v556
          %v621 = vunpack.c.l.b16 %v557
          %v622 = vpack.c.b16 %v591, %v590
          %v623 = vpack.c.b16 %v593, %v592
          %v624 = vpack.c.b16 %v595, %v594
          %v625 = vpack.c.b16 %v597, %v596
          %v626 = vpack.c.b16 %v599, %v598
          %v627 = vpack.c.b16 %v601, %v600
          %v628 = vpack.c.b16 %v603, %v602
          %v629 = vpack.c.b16 %v605, %v604
          %v630 = vpack.c.b16 %v607, %v606
          %v631 = vpack.c.b16 %v609, %v608
          %v632 = vpack.c.b16 %v611, %v610
          %v633 = vpack.c.b16 %v613, %v612
          %v634 = vpack.c.b16 %v615, %v614
          %v635 = vpack.c.b16 %v617, %v616
          %v636 = vpack.c.b16 %v619, %v618
          %v637 = vpack.c.b16 %v621, %v620
          %654 = vst [vmem:[#allocation2 + $0x8] sm:$0xff] %v622
          %655 = vst [vmem:[#allocation2 + $0x10] sm:$0xff] %v623
          %656 = vst [vmem:[#allocation2 + $0x18] sm:$0xff] %v624
          %657 = vst [vmem:[#allocation2 + $0x20] sm:$0xff] %v625
          %658 = vst [vmem:[#allocation2 + $0x28] sm:$0xff] %v626
          %659 = vst [vmem:[#allocation2 + $0x30] sm:$0xff] %v627
          %660 = vst [vmem:[#allocation2 + $0x38] sm:$0xff] %v628
          %661 = vst [vmem:[#allocation2 + $0x40] sm:$0xff] %v629
          %662 = vst [vmem:[#allocation2 + $0x48] sm:$0xff] %v630
          %663 = vst [vmem:[#allocation2 + $0x50] sm:$0xff] %v631
          %664 = vst [vmem:[#allocation2 + $0x58] sm:$0xff] %v632
          %665 = vst [vmem:[#allocation2 + $0x60] sm:$0xff] %v633
          %666 = vst [vmem:[#allocation2 + $0x68] sm:$0xff] %v634
          %667 = vst [vmem:[#allocation2 + $0x70] sm:$0xff] %v635
          %668 = vst [vmem:[#allocation2 + $0x78] sm:$0xff] %v636
          %669 = vst [vmem:[#allocation2 + $0x80] sm:$0xff] %v637
          %v670 = vld [vmem:[%s492] sm:$0xf]
          %v671 = vld [vmem:[%s492 + $0x4] sm:$0xf]
          %v674 = vunpack.c.l.b16 %v670
          %v675 = vunpack.c.l.b16 %v671
          %v676 = vpack.c.b16 %v675, %v674
          %678 = vst [vmem:[#allocation2 + $0x88] sm:$0xff] %v676
          %p679 = scmp.eq.s32.totalorder %s24, 0
          // Predicated region
          $region53: #{tpu_custom_call.1} parent=51 // pred_check
            %p680 = pneg %p679
          $region54: #{tpu_custom_call.1} parent=51 // pred_check_branch
            %682 = sbr.rel (%p680) target = $region56
          $region55: #{tpu_custom_call.1} parent=51 // pred_region
            %683 = vst [vmem:[#allocation2] sm:$0xff] 0
          $region56: #{tpu_custom_call.1} parent=51 // pred_fallthru
            _
          %s684 = smul.u32 %s24, 256
          %s685 = ssub.s32 %s684, 16
          %s686 = sadd.s32 %s684, 272
          %p687 = scmp.gt.s32.totalorder %s686, 300
          // Predicated region
          $region57: #{tpu_custom_call.1} parent=51 // pred_check
            %p688 = pneg %p687
          $region58: #{tpu_custom_call.1} parent=51 // pred_check_branch
            %690 = sbr.rel (%p688) target = $region60
          $region59: #{tpu_custom_call.1} parent=51 // pred_region
            %v691 = vlaneseq
            %v692 = vshrl.u32 %v691, 7
            %v693 = vadd.s32 %v692, 8
            %v694 = vadd.s32 %v692, 16
            %v695 = vadd.s32 %v692, 24
            %v696 = vadd.s32 %v692, 32
            %v697 = vadd.s32 %v692, 40
            %v698 = vadd.s32 %v692, 48
            %v699 = vadd.s32 %v692, 56
            %v700 = vadd.s32 %v692, 64
            %v701 = vadd.s32 %v692, 72
            %v702 = vadd.s32 %v692, 80
            %v703 = vadd.s32 %v692, 88
            %v704 = vadd.s32 %v692, 96
            %v705 = vadd.s32 %v692, 104
            %v706 = vadd.s32 %v692, 112
            %v707 = vadd.s32 %v692, 120
            %v708 = vadd.s32 %v692, 128
            %v709 = vadd.s32 %v692, 136
            %v710 = vadd.s32 %v692, 144
            %v711 = vadd.s32 %v692, 152
            %v712 = vadd.s32 %v692, 160
            %v713 = vadd.s32 %v692, 168
            %v714 = vadd.s32 %v692, 176
            %v715 = vadd.s32 %v692, 184
            %v716 = vadd.s32 %v692, 192
            %v717 = vadd.s32 %v692, 200
            %v718 = vadd.s32 %v692, 208
            %v719 = vadd.s32 %v692, 216
            %v720 = vadd.s32 %v692, 224
            %v721 = vadd.s32 %v692, 232
            %v722 = vadd.s32 %v692, 240
            %v723 = vadd.s32 %v692, 248
            %v724 = vadd.s32 %v692, 256
            %v725 = vadd.s32 %v692, 264
            %v726 = vadd.s32 %v692, 272
            %v727 = vadd.s32 %v692, 280
            %v728 = vstv %s685
            %v729 = vadd.s32 %v728, %v692
            %v730 = vadd.s32 %v728, %v693
            %v731 = vadd.s32 %v728, %v694
            %v732 = vadd.s32 %v728, %v695
            %v733 = vadd.s32 %v728, %v696
            %v734 = vadd.s32 %v728, %v697
            %v735 = vadd.s32 %v728, %v698
            %v736 = vadd.s32 %v728, %v699
            %v737 = vadd.s32 %v728, %v700
            %v738 = vadd.s32 %v728, %v701
            %v739 = vadd.s32 %v728, %v702
            %v740 = vadd.s32 %v728, %v703
            %v741 = vadd.s32 %v728, %v704
            %v742 = vadd.s32 %v728, %v705
            %v743 = vadd.s32 %v728, %v706
            %v744 = vadd.s32 %v728, %v707
            %v745 = vadd.s32 %v728, %v708
            %v746 = vadd.s32 %v728, %v709
            %v747 = vadd.s32 %v728, %v710
            %v748 = vadd.s32 %v728, %v711
            %v749 = vadd.s32 %v728, %v712
            %v750 = vadd.s32 %v728, %v713
            %v751 = vadd.s32 %v728, %v714
            %v752 = vadd.s32 %v728, %v715
            %v753 = vadd.s32 %v728, %v716
            %v754 = vadd.s32 %v728, %v717
            %v755 = vadd.s32 %v728, %v718
            %v756 = vadd.s32 %v728, %v719
            %v757 = vadd.s32 %v728, %v720
            %v758 = vadd.s32 %v728, %v721
            %v759 = vadd.s32 %v728, %v722
            %v760 = vadd.s32 %v728, %v723
            %v761 = vadd.s32 %v728, %v724
            %v762 = vadd.s32 %v728, %v725
            %v763 = vadd.s32 %v728, %v726
            %v764 = vadd.s32 %v728, %v727
            %vm765 = vcmp.lt.s32.totalorder %v729, 300
            %vm766 = vcmp.lt.s32.totalorder %v730, 300
            %vm767 = vcmp.lt.s32.totalorder %v731, 300
            %vm768 = vcmp.lt.s32.totalorder %v732, 300
            %vm769 = vcmp.lt.s32.totalorder %v733, 300
            %vm770 = vcmp.lt.s32.totalorder %v734, 300
            %vm771 = vcmp.lt.s32.totalorder %v735, 300
            %vm772 = vcmp.lt.s32.totalorder %v736, 300
            %vm773 = vcmp.lt.s32.totalorder %v737, 300
            %vm774 = vcmp.lt.s32.totalorder %v738, 300
            %vm775 = vcmp.lt.s32.totalorder %v739, 300
            %vm776 = vcmp.lt.s32.totalorder %v740, 300
            %vm777 = vcmp.lt.s32.totalorder %v741, 300
            %vm778 = vcmp.lt.s32.totalorder %v742, 300
            %vm779 = vcmp.lt.s32.totalorder %v743, 300
            %vm780 = vcmp.lt.s32.totalorder %v744, 300
            %vm781 = vcmp.lt.s32.totalorder %v745, 300
            %vm782 = vcmp.lt.s32.totalorder %v746, 300
            %vm783 = vcmp.lt.s32.totalorder %v747, 300
            %vm784 = vcmp.lt.s32.totalorder %v748, 300
            %vm785 = vcmp.lt.s32.totalorder %v749, 300
            %vm786 = vcmp.lt.s32.totalorder %v750, 300
            %vm787 = vcmp.lt.s32.totalorder %v751, 300
            %vm788 = vcmp.lt.s32.totalorder %v752, 300
            %vm789 = vcmp.lt.s32.totalorder %v753, 300
            %vm790 = vcmp.lt.s32.totalorder %v754, 300
            %vm791 = vcmp.lt.s32.totalorder %v755, 300
            %vm792 = vcmp.lt.s32.totalorder %v756, 300
            %vm793 = vcmp.lt.s32.totalorder %v757, 300
            %vm794 = vcmp.lt.s32.totalorder %v758, 300
            %vm795 = vcmp.lt.s32.totalorder %v759, 300
            %vm796 = vcmp.lt.s32.totalorder %v760, 300
            %vm797 = vcmp.lt.s32.totalorder %v761, 300
            %vm798 = vcmp.lt.s32.totalorder %v762, 300
            %vm799 = vcmp.lt.s32.totalorder %v763, 300
            %vm800 = vcmp.lt.s32.totalorder %v764, 300
            %v801 = vld [vmem:[#allocation2] sm:$0xff]
            %v802 = vld [vmem:[#allocation2 + $0x8] sm:$0xff]
            %v803 = vld [vmem:[#allocation2 + $0x10] sm:$0xff]
            %v804 = vld [vmem:[#allocation2 + $0x18] sm:$0xff]
            %v805 = vld [vmem:[#allocation2 + $0x20] sm:$0xff]
            %v806 = vld [vmem:[#allocation2 + $0x28] sm:$0xff]
            %v807 = vld [vmem:[#allocation2 + $0x30] sm:$0xff]
            %v808 = vld [vmem:[#allocation2 + $0x38] sm:$0xff]
            %v809 = vld [vmem:[#allocation2 + $0x40] sm:$0xff]
            %v810 = vld [vmem:[#allocation2 + $0x48] sm:$0xff]
            %v811 = vld [vmem:[#allocation2 + $0x50] sm:$0xff]
            %v812 = vld [vmem:[#allocation2 + $0x58] sm:$0xff]
            %v813 = vld [vmem:[#allocation2 + $0x60] sm:$0xff]
            %v814 = vld [vmem:[#allocation2 + $0x68] sm:$0xff]
            %v815 = vld [vmem:[#allocation2 + $0x70] sm:$0xff]
            %v816 = vld [vmem:[#allocation2 + $0x78] sm:$0xff]
            %v817 = vld [vmem:[#allocation2 + $0x80] sm:$0xff]
            %v818 = vld [vmem:[#allocation2 + $0x88] sm:$0xff]
            %v819 = vsel %vm765, 1, 0
            %v820 = vsel %vm766, 1, 0
            %v821 = vsel %vm767, 1, 0
            %v822 = vsel %vm768, 1, 0
            %v823 = vsel %vm769, 1, 0
            %v824 = vsel %vm770, 1, 0
            %v825 = vsel %vm771, 1, 0
            %v826 = vsel %vm772, 1, 0
            %v827 = vsel %vm773, 1, 0
            %v828 = vsel %vm774, 1, 0
            %v829 = vsel %vm775, 1, 0
            %v830 = vsel %vm776, 1, 0
            %v831 = vsel %vm777, 1, 0
            %v832 = vsel %vm778, 1, 0
            %v833 = vsel %vm779, 1, 0
            %v834 = vsel %vm780, 1, 0
            %v835 = vsel %vm781, 1, 0
            %v836 = vsel %vm782, 1, 0
            %v837 = vsel %vm783, 1, 0
            %v838 = vsel %vm784, 1, 0
            %v839 = vsel %vm785, 1, 0
            %v840 = vsel %vm786, 1, 0
            %v841 = vsel %vm787, 1, 0
            %v842 = vsel %vm788, 1, 0
            %v843 = vsel %vm789, 1, 0
            %v844 = vsel %vm790, 1, 0
            %v845 = vsel %vm791, 1, 0
            %v846 = vsel %vm792, 1, 0
            %v847 = vsel %vm793, 1, 0
            %v848 = vsel %vm794, 1, 0
            %v849 = vsel %vm795, 1, 0
            %v850 = vsel %vm796, 1, 0
            %v851 = vsel %vm797, 1, 0
            %v852 = vsel %vm798, 1, 0
            %v853 = vsel %vm799, 1, 0
            %v854 = vsel %vm800, 1, 0
            %vm855 = vcmp.eq.s32.totalorder %v819, 1
            %vm856 = vcmp.eq.s32.totalorder %v820, 1
            %vm857 = vcmp.eq.s32.totalorder %v821, 1
            %vm858 = vcmp.eq.s32.totalorder %v822, 1
            %vm859 = vcmp.eq.s32.totalorder %v823, 1
            %vm860 = vcmp.eq.s32.totalorder %v824, 1
            %vm861 = vcmp.eq.s32.totalorder %v825, 1
            %vm862 = vcmp.eq.s32.totalorder %v826, 1
            %vm863 = vcmp.eq.s32.totalorder %v827, 1
            %vm864 = vcmp.eq.s32.totalorder %v828, 1
            %vm865 = vcmp.eq.s32.totalorder %v829, 1
            %vm866 = vcmp.eq.s32.totalorder %v830, 1
            %vm867 = vcmp.eq.s32.totalorder %v831, 1
            %vm868 = vcmp.eq.s32.totalorder %v832, 1
            %vm869 = vcmp.eq.s32.totalorder %v833, 1
            %vm870 = vcmp.eq.s32.totalorder %v834, 1
            %vm871 = vcmp.eq.s32.totalorder %v835, 1
            %vm872 = vcmp.eq.s32.totalorder %v836, 1
            %vm873 = vcmp.eq.s32.totalorder %v837, 1
            %vm874 = vcmp.eq.s32.totalorder %v838, 1
            %vm875 = vcmp.eq.s32.totalorder %v839, 1
            %vm876 = vcmp.eq.s32.totalorder %v840, 1
            %vm877 = vcmp.eq.s32.totalorder %v841, 1
            %vm878 = vcmp.eq.s32.totalorder %v842, 1
            %vm879 = vcmp.eq.s32.totalorder %v843, 1
            %vm880 = vcmp.eq.s32.totalorder %v844, 1
            %vm881 = vcmp.eq.s32.totalorder %v845, 1
            %vm882 = vcmp.eq.s32.totalorder %v846, 1
            %vm883 = vcmp.eq.s32.totalorder %v847, 1
            %vm884 = vcmp.eq.s32.totalorder %v848, 1
            %vm885 = vcmp.eq.s32.totalorder %v849, 1
            %vm886 = vcmp.eq.s32.totalorder %v850, 1
            %vm887 = vcmp.eq.s32.totalorder %v851, 1
            %vm888 = vcmp.eq.s32.totalorder %v852, 1
            %vm889 = vcmp.eq.s32.totalorder %v853, 1
            %vm890 = vcmp.eq.s32.totalorder %v854, 1
            %vm891 = vmpackc.low %vm855, %vm855
            %vm892 = vmpackc.low %vm856, %vm856
            %vm893 = vmpackc.low %vm857, %vm857
            %vm894 = vmpackc.low %vm858, %vm858
            %vm895 = vmpackc.low %vm859, %vm859
            %vm896 = vmpackc.low %vm860, %vm860
            %vm897 = vmpackc.low %vm861, %vm861
            %vm898 = vmpackc.low %vm862, %vm862
            %vm899 = vmpackc.low %vm863, %vm863
            %vm900 = vmpackc.low %vm864, %vm864
            %vm901 = vmpackc.low %vm865, %vm865
            %vm902 = vmpackc.low %vm866, %vm866
            %vm903 = vmpackc.low %vm867, %vm867
            %vm904 = vmpackc.low %vm868, %vm868
            %vm905 = vmpackc.low %vm869, %vm869
            %vm906 = vmpackc.low %vm870, %vm870
            %vm907 = vmpackc.low %vm871, %vm871
            %vm908 = vmpackc.low %vm872, %vm872
            %vm909 = vmpackc.low %vm873, %vm873
            %vm910 = vmpackc.low %vm874, %vm874
            %vm911 = vmpackc.low %vm875, %vm875
            %vm912 = vmpackc.low %vm876, %vm876
            %vm913 = vmpackc.low %vm877, %vm877
            %vm914 = vmpackc.low %vm878, %vm878
            %vm915 = vmpackc.low %vm879, %vm879
            %vm916 = vmpackc.low %vm880, %vm880
            %vm917 = vmpackc.low %vm881, %vm881
            %vm918 = vmpackc.low %vm882, %vm882
            %vm919 = vmpackc.low %vm883, %vm883
            %vm920 = vmpackc.low %vm884, %vm884
            %vm921 = vmpackc.low %vm885, %vm885
            %vm922 = vmpackc.low %vm886, %vm886
            %vm923 = vmpackc.low %vm887, %vm887
            %vm924 = vmpackc.low %vm888, %vm888
            %vm925 = vmpackc.low %vm889, %vm889
            %vm926 = vmpackc.low %vm890, %vm890
            %v927 = vsel %vm891, 65537, 0
            %v928 = vsel %vm892, 65537, 0
            %v929 = vsel %vm893, 65537, 0
            %v930 = vsel %vm894, 65537, 0
            %v931 = vsel %vm895, 65537, 0
            %v932 = vsel %vm896, 65537, 0
            %v933 = vsel %vm897, 65537, 0
            %v934 = vsel %vm898, 65537, 0
            %v935 = vsel %vm899, 65537, 0
            %v936 = vsel %vm900, 65537, 0
            %v937 = vsel %vm901, 65537, 0
            %v938 = vsel %vm902, 65537, 0
            %v939 = vsel %vm903, 65537, 0
            %v940 = vsel %vm904, 65537, 0
            %v941 = vsel %vm905, 65537, 0
            %v942 = vsel %vm906, 65537, 0
            %v943 = vsel %vm907, 65537, 0
            %v944 = vsel %vm908, 65537, 0
            %v945 = vsel %vm909, 65537, 0
            %v946 = vsel %vm910, 65537, 0
            %v947 = vsel %vm911, 65537, 0
            %v948 = vsel %vm912, 65537, 0
            %v949 = vsel %vm913, 65537, 0
            %v950 = vsel %vm914, 65537, 0
            %v951 = vsel %vm915, 65537, 0
            %v952 = vsel %vm916, 65537, 0
            %v953 = vsel %vm917, 65537, 0
            %v954 = vsel %vm918, 65537, 0
            %v955 = vsel %vm919, 65537, 0
            %v956 = vsel %vm920, 65537, 0
            %v957 = vsel %vm921, 65537, 0
            %v958 = vsel %vm922, 65537, 0
            %v959 = vsel %vm923, 65537, 0
            %v960 = vsel %vm924, 65537, 0
            %v961 = vsel %vm925, 65537, 0
            %v962 = vsel %vm926, 65537, 0
            %v963 = vunpack.c.l.b16 %v927
            %v964 = vunpack.c.l.b16 %v928
            %v965 = vunpack.c.l.b16 %v929
            %v966 = vunpack.c.l.b16 %v930
            %v967 = vunpack.c.l.b16 %v931
            %v968 = vunpack.c.l.b16 %v932
            %v969 = vunpack.c.l.b16 %v933
            %v970 = vunpack.c.l.b16 %v934
            %v971 = vunpack.c.l.b16 %v935
            %v972 = vunpack.c.l.b16 %v936
            %v973 = vunpack.c.l.b16 %v937
            %v974 = vunpack.c.l.b16 %v938
            %v975 = vunpack.c.l.b16 %v939
            %v976 = vunpack.c.l.b16 %v940
            %v977 = vunpack.c.l.b16 %v941
            %v978 = vunpack.c.l.b16 %v942
            %v979 = vunpack.c.l.b16 %v943
            %v980 = vunpack.c.l.b16 %v944
            %v981 = vunpack.c.l.b16 %v945
            %v982 = vunpack.c.l.b16 %v946
            %v983 = vunpack.c.l.b16 %v947
            %v984 = vunpack.c.l.b16 %v948
            %v985 = vunpack.c.l.b16 %v949
            %v986 = vunpack.c.l.b16 %v950
            %v987 = vunpack.c.l.b16 %v951
            %v988 = vunpack.c.l.b16 %v952
            %v989 = vunpack.c.l.b16 %v953
            %v990 = vunpack.c.l.b16 %v954
            %v991 = vunpack.c.l.b16 %v955
            %v992 = vunpack.c.l.b16 %v956
            %v993 = vunpack.c.l.b16 %v957
            %v994 = vunpack.c.l.b16 %v958
            %v995 = vunpack.c.l.b16 %v959
            %v996 = vunpack.c.l.b16 %v960
            %v997 = vunpack.c.l.b16 %v961
            %v998 = vunpack.c.l.b16 %v962
            %v999 = vpack.c.b16 %v964, %v963
            %v1000 = vpack.c.b16 %v966, %v965
            %v1001 = vpack.c.b16 %v968, %v967
            %v1002 = vpack.c.b16 %v970, %v969
            %v1003 = vpack.c.b16 %v972, %v971
            %v1004 = vpack.c.b16 %v974, %v973
            %v1005 = vpack.c.b16 %v976, %v975
            %v1006 = vpack.c.b16 %v978, %v977
            %v1007 = vpack.c.b16 %v980, %v979
            %v1008 = vpack.c.b16 %v982, %v981
            %v1009 = vpack.c.b16 %v984, %v983
            %v1010 = vpack.c.b16 %v986, %v985
            %v1011 = vpack.c.b16 %v988, %v987
            %v1012 = vpack.c.b16 %v990, %v989
            %v1013 = vpack.c.b16 %v992, %v991
            %v1014 = vpack.c.b16 %v994, %v993
            %v1015 = vpack.c.b16 %v996, %v995
            %v1016 = vpack.c.b16 %v998, %v997
            %vm1017 = vcmp.ne.s16.totalorder %v999, 0
            %vm1018 = vcmp.ne.s16.totalorder %v1000, 0
            %vm1019 = vcmp.ne.s16.totalorder %v1001, 0
            %vm1020 = vcmp.ne.s16.totalorder %v1002, 0
            %vm1021 = vcmp.ne.s16.totalorder %v1003, 0
            %vm1022 = vcmp.ne.s16.totalorder %v1004, 0
            %vm1023 = vcmp.ne.s16.totalorder %v1005, 0
            %vm1024 = vcmp.ne.s16.totalorder %v1006, 0
            %vm1025 = vcmp.ne.s16.totalorder %v1007, 0
            %vm1026 = vcmp.ne.s16.totalorder %v1008, 0
            %vm1027 = vcmp.ne.s16.totalorder %v1009, 0
            %vm1028 = vcmp.ne.s16.totalorder %v1010, 0
            %vm1029 = vcmp.ne.s16.totalorder %v1011, 0
            %vm1030 = vcmp.ne.s16.totalorder %v1012, 0
            %vm1031 = vcmp.ne.s16.totalorder %v1013, 0
            %vm1032 = vcmp.ne.s16.totalorder %v1014, 0
            %vm1033 = vcmp.ne.s16.totalorder %v1015, 0
            %vm1034 = vcmp.ne.s16.totalorder %v1016, 0
            %v1035 = vsel %vm1017, %v801, 0
            %v1036 = vsel %vm1018, %v802, 0
            %v1037 = vsel %vm1019, %v803, 0
            %v1038 = vsel %vm1020, %v804, 0
            %v1039 = vsel %vm1021, %v805, 0
            %v1040 = vsel %vm1022, %v806, 0
            %v1041 = vsel %vm1023, %v807, 0
            %v1042 = vsel %vm1024, %v808, 0
            %v1043 = vsel %vm1025, %v809, 0
            %v1044 = vsel %vm1026, %v810, 0
            %v1045 = vsel %vm1027, %v811, 0
            %v1046 = vsel %vm1028, %v812, 0
            %v1047 = vsel %vm1029, %v813, 0
            %v1048 = vsel %vm1030, %v814, 0
            %v1049 = vsel %vm1031, %v815, 0
            %v1050 = vsel %vm1032, %v816, 0
            %v1051 = vsel %vm1033, %v817, 0
            %v1052 = vsel %vm1034, %v818, 0
            %1053 = vst [vmem:[#allocation2] sm:$0xff] %v1035
            %1054 = vst [vmem:[#allocation2 + $0x8] sm:$0xff] %v1036
            %1055 = vst [vmem:[#allocation2 + $0x10] sm:$0xff] %v1037
            %1056 = vst [vmem:[#allocation2 + $0x18] sm:$0xff] %v1038
            %1057 = vst [vmem:[#allocation2 + $0x20] sm:$0xff] %v1039
            %1058 = vst [vmem:[#allocation2 + $0x28] sm:$0xff] %v1040
            %1059 = vst [vmem:[#allocation2 + $0x30] sm:$0xff] %v1041
            %1060 = vst [vmem:[#allocation2 + $0x38] sm:$0xff] %v1042
            %1061 = vst [vmem:[#allocation2 + $0x40] sm:$0xff] %v1043
            %1062 = vst [vmem:[#allocation2 + $0x48] sm:$0xff] %v1044
            %1063 = vst [vmem:[#allocation2 + $0x50] sm:$0xff] %v1045
            %1064 = vst [vmem:[#allocation2 + $0x58] sm:$0xff] %v1046
            %1065 = vst [vmem:[#allocation2 + $0x60] sm:$0xff] %v1047
            %1066 = vst [vmem:[#allocation2 + $0x68] sm:$0xff] %v1048
            %1067 = vst [vmem:[#allocation2 + $0x70] sm:$0xff] %v1049
            %1068 = vst [vmem:[#allocation2 + $0x78] sm:$0xff] %v1050
            %1069 = vst [vmem:[#allocation2 + $0x80] sm:$0xff] %v1051
            %1070 = vst [vmem:[#allocation2 + $0x88] sm:$0xff] %v1052
          $region60: #{tpu_custom_call.1} parent=51 // pred_fallthru
            _
          %v1071 = vld [vmem:[%s3] sm:$0x7]
          %v1072 = vld [vmem:[#allocation2] sm:$0x80]
          %v1073 = vld [vmem:[#allocation2 + $0x8] sm:$0xff]
          %v1074 = vld [vmem:[#allocation2 + $0x10] sm:$0xff]
          %v1075 = vld [vmem:[#allocation2 + $0x18] sm:$0xff]
          %v1076 = vld [vmem:[#allocation2 + $0x20] sm:$0xff]
          %v1077 = vld [vmem:[#allocation2 + $0x28] sm:$0xff]
          %v1078 = vld [vmem:[#allocation2 + $0x30] sm:$0xff]
          %v1079 = vld [vmem:[#allocation2 + $0x38] sm:$0xff]
          %v1080 = vld [vmem:[#allocation2 + $0x40] sm:$0xff]
          %v1081 = vld [vmem:[#allocation2 + $0x48] sm:$0xff]
          %v1082 = vld [vmem:[#allocation2 + $0x50] sm:$0xff]
          %v1083 = vld [vmem:[#allocation2 + $0x58] sm:$0xff]
          %v1084 = vld [vmem:[#allocation2 + $0x60] sm:$0xff]
          %v1085 = vld [vmem:[#allocation2 + $0x68] sm:$0xff]
          %v1086 = vld [vmem:[#allocation2 + $0x70] sm:$0xff]
          %v1087 = vld [vmem:[#allocation2 + $0x78] sm:$0xff]
          %v1088 = vld [vmem:[#allocation2 + $0x80] sm:$0xff]
          %vm1106 = vcmask 1043456
          %v1107 = vrot.slane %v1072, 4
          %v1108 = vrot.slane %v1073, 4
          %v1109 = vsel %vm1106, %v1107, %v1108
          %v1110 = vrot.slane %v1074, 4
          %v1111 = vsel %vm1106, %v1108, %v1110
          %v1112 = vrot.slane %v1075, 4
          %v1113 = vsel %vm1106, %v1110, %v1112
          %v1114 = vrot.slane %v1076, 4
          %v1115 = vsel %vm1106, %v1112, %v1114
          %v1116 = vrot.slane %v1077, 4
          %v1117 = vsel %vm1106, %v1114, %v1116
          %v1118 = vrot.slane %v1078, 4
          %v1119 = vsel %vm1106, %v1116, %v1118
          %v1120 = vrot.slane %v1079, 4
          %v1121 = vsel %vm1106, %v1118, %v1120
          %v1122 = vrot.slane %v1080, 4
          %v1123 = vsel %vm1106, %v1120, %v1122
          %v1124 = vrot.slane %v1081, 4
          %v1125 = vsel %vm1106, %v1122, %v1124
          %v1126 = vrot.slane %v1082, 4
          %v1127 = vsel %vm1106, %v1124, %v1126
          %v1128 = vrot.slane %v1083, 4
          %v1129 = vsel %vm1106, %v1126, %v1128
          %v1130 = vrot.slane %v1084, 4
          %v1131 = vsel %vm1106, %v1128, %v1130
          %v1132 = vrot.slane %v1085, 4
          %v1133 = vsel %vm1106, %v1130, %v1132
          %v1134 = vrot.slane %v1086, 4
          %v1135 = vsel %vm1106, %v1132, %v1134
          %v1136 = vrot.slane %v1087, 4
          %v1137 = vsel %vm1106, %v1134, %v1136
          %v1138 = vrot.slane %v1088, 4
          %v1139 = vsel %vm1106, %v1136, %v1138
          %v1157 = vunpack.c.l.bf16 %v1109
          %v1158 = vunpack.c.h.bf16 %v1109
          %v1159 = vunpack.c.l.bf16 %v1111
          %v1160 = vunpack.c.h.bf16 %v1111
          %v1161 = vunpack.c.l.bf16 %v1113
          %v1162 = vunpack.c.h.bf16 %v1113
          %v1163 = vunpack.c.l.bf16 %v1115
          %v1164 = vunpack.c.h.bf16 %v1115
          %v1165 = vunpack.c.l.bf16 %v1117
          %v1166 = vunpack.c.h.bf16 %v1117
          %v1167 = vunpack.c.l.bf16 %v1119
          %v1168 = vunpack.c.h.bf16 %v1119
          %v1169 = vunpack.c.l.bf16 %v1121
          %v1170 = vunpack.c.h.bf16 %v1121
          %v1171 = vunpack.c.l.bf16 %v1123
          %v1172 = vunpack.c.h.bf16 %v1123
          %v1173 = vunpack.c.l.bf16 %v1125
          %v1174 = vunpack.c.h.bf16 %v1125
          %v1175 = vunpack.c.l.bf16 %v1127
          %v1176 = vunpack.c.h.bf16 %v1127
          %v1177 = vunpack.c.l.bf16 %v1129
          %v1178 = vunpack.c.h.bf16 %v1129
          %v1179 = vunpack.c.l.bf16 %v1131
          %v1180 = vunpack.c.h.bf16 %v1131
          %v1181 = vunpack.c.l.bf16 %v1133
          %v1182 = vunpack.c.h.bf16 %v1133
          %v1183 = vunpack.c.l.bf16 %v1135
          %v1184 = vunpack.c.h.bf16 %v1135
          %v1185 = vunpack.c.l.bf16 %v1137
          %v1186 = vunpack.c.h.bf16 %v1137
          %v1187 = vunpack.c.l.bf16 %v1139
          %v1188 = vunpack.c.h.bf16 %v1139
          %v1189 = vunpack.c.l.bf16 %v1138
          %v1190 = vlaneseq
          %v1191 = vshrl.u32 %v1190, 7
          %v1192 = vsub.s32 0, %v1191
          %v1193 = vrot.slane %v1071, %v1192
          %v1194 = vmul.f32 %v1157, %v1193
          %v1195 = vmul.f32 %v1158, %v1193
          %v1196 = vmul.f32 %v1159, %v1193
          %v1197 = vmul.f32 %v1160, %v1193
          %v1198 = vmul.f32 %v1161, %v1193
          %v1199 = vmul.f32 %v1162, %v1193
          %v1200 = vmul.f32 %v1163, %v1193
          %v1201 = vmul.f32 %v1164, %v1193
          %v1202 = vmul.f32 %v1165, %v1193
          %v1203 = vmul.f32 %v1166, %v1193
          %v1204 = vmul.f32 %v1167, %v1193
          %v1205 = vmul.f32 %v1168, %v1193
          %v1206 = vmul.f32 %v1169, %v1193
          %v1207 = vmul.f32 %v1170, %v1193
          %v1208 = vmul.f32 %v1171, %v1193
          %v1209 = vmul.f32 %v1172, %v1193
          %v1210 = vmul.f32 %v1173, %v1193
          %v1211 = vmul.f32 %v1174, %v1193
          %v1212 = vmul.f32 %v1175, %v1193
          %v1213 = vmul.f32 %v1176, %v1193
          %v1214 = vmul.f32 %v1177, %v1193
          %v1215 = vmul.f32 %v1178, %v1193
          %v1216 = vmul.f32 %v1179, %v1193
          %v1217 = vmul.f32 %v1180, %v1193
          %v1218 = vmul.f32 %v1181, %v1193
          %v1219 = vmul.f32 %v1182, %v1193
          %v1220 = vmul.f32 %v1183, %v1193
          %v1221 = vmul.f32 %v1184, %v1193
          %v1222 = vmul.f32 %v1185, %v1193
          %v1223 = vmul.f32 %v1186, %v1193
          %v1224 = vmul.f32 %v1187, %v1193
          %v1225 = vmul.f32 %v1188, %v1193
          %v1226 = vmul.f32 %v1189, %v1193
          %v1227 = vunpack.c.l.bf16 %v1073
          %v1228 = vunpack.c.h.bf16 %v1073
          %v1229 = vunpack.c.l.bf16 %v1074
          %v1230 = vunpack.c.h.bf16 %v1074
          %v1231 = vunpack.c.l.bf16 %v1075
          %v1232 = vunpack.c.h.bf16 %v1075
          %v1233 = vunpack.c.l.bf16 %v1076
          %v1234 = vunpack.c.h.bf16 %v1076
          %v1235 = vunpack.c.l.bf16 %v1077
          %v1236 = vunpack.c.h.bf16 %v1077
          %v1237 = vunpack.c.l.bf16 %v1078
          %v1238 = vunpack.c.h.bf16 %v1078
          %v1239 = vunpack.c.l.bf16 %v1079
          %v1240 = vunpack.c.h.bf16 %v1079
          %v1241 = vunpack.c.l.bf16 %v1080
          %v1242 = vunpack.c.h.bf16 %v1080
          %v1243 = vunpack.c.l.bf16 %v1081
          %v1244 = vunpack.c.h.bf16 %v1081
          %v1245 = vunpack.c.l.bf16 %v1082
          %v1246 = vunpack.c.h.bf16 %v1082
          %v1247 = vunpack.c.l.bf16 %v1083
          %v1248 = vunpack.c.h.bf16 %v1083
          %v1249 = vunpack.c.l.bf16 %v1084
          %v1250 = vunpack.c.h.bf16 %v1084
          %v1251 = vunpack.c.l.bf16 %v1085
          %v1252 = vunpack.c.h.bf16 %v1085
          %v1253 = vunpack.c.l.bf16 %v1086
          %v1254 = vunpack.c.h.bf16 %v1086
          %v1255 = vunpack.c.l.bf16 %v1087
          %v1256 = vunpack.c.h.bf16 %v1087
          %v1257 = vunpack.c.l.bf16 %v1088
          %v1258 = vunpack.c.h.bf16 %v1088
          %v1259 = vlaneseq
          %v1260 = vshrl.u32 %v1259, 7
          %v1261 = vsub.s32 1, %v1260
          %v1262 = vrot.slane %v1071, %v1261
          %v1263 = vmul.f32 %v1227, %v1262
          %v1264 = vmul.f32 %v1228, %v1262
          %v1265 = vmul.f32 %v1229, %v1262
          %v1266 = vmul.f32 %v1230, %v1262
          %v1267 = vmul.f32 %v1231, %v1262
          %v1268 = vmul.f32 %v1232, %v1262
          %v1269 = vmul.f32 %v1233, %v1262
          %v1270 = vmul.f32 %v1234, %v1262
          %v1271 = vmul.f32 %v1235, %v1262
          %v1272 = vmul.f32 %v1236, %v1262
          %v1273 = vmul.f32 %v1237, %v1262
          %v1274 = vmul.f32 %v1238, %v1262
          %v1275 = vmul.f32 %v1239, %v1262
          %v1276 = vmul.f32 %v1240, %v1262
          %v1277 = vmul.f32 %v1241, %v1262
          %v1278 = vmul.f32 %v1242, %v1262
          %v1279 = vmul.f32 %v1243, %v1262
          %v1280 = vmul.f32 %v1244, %v1262
          %v1281 = vmul.f32 %v1245, %v1262
          %v1282 = vmul.f32 %v1246, %v1262
          %v1283 = vmul.f32 %v1247, %v1262
          %v1284 = vmul.f32 %v1248, %v1262
          %v1285 = vmul.f32 %v1249, %v1262
          %v1286 = vmul.f32 %v1250, %v1262
          %v1287 = vmul.f32 %v1251, %v1262
          %v1288 = vmul.f32 %v1252, %v1262
          %v1289 = vmul.f32 %v1253, %v1262
          %v1290 = vmul.f32 %v1254, %v1262
          %v1291 = vmul.f32 %v1255, %v1262
          %v1292 = vmul.f32 %v1256, %v1262
          %v1293 = vmul.f32 %v1257, %v1262
          %v1294 = vmul.f32 %v1258, %v1262
          %vm1327 = vcmask 1046528
          %v1328 = vrot.slane %v1263, 1
          %v1329 = vrot.slane %v1264, 1
          %v1330 = vsel %vm1327, %v1328, %v1329
          %v1331 = vrot.slane %v1265, 1
          %v1332 = vsel %vm1327, %v1329, %v1331
          %v1333 = vrot.slane %v1266, 1
          %v1334 = vsel %vm1327, %v1331, %v1333
          %v1335 = vrot.slane %v1267, 1
          %v1336 = vsel %vm1327, %v1333, %v1335
          %v1337 = vrot.slane %v1268, 1
          %v1338 = vsel %vm1327, %v1335, %v1337
          %v1339 = vrot.slane %v1269, 1
          %v1340 = vsel %vm1327, %v1337, %v1339
          %v1341 = vrot.slane %v1270, 1
          %v1342 = vsel %vm1327, %v1339, %v1341
          %v1343 = vrot.slane %v1271, 1
          %v1344 = vsel %vm1327, %v1341, %v1343
          %v1345 = vrot.slane %v1272, 1
          %v1346 = vsel %vm1327, %v1343, %v1345
          %v1347 = vrot.slane %v1273, 1
          %v1348 = vsel %vm1327, %v1345, %v1347
          %v1349 = vrot.slane %v1274, 1
          %v1350 = vsel %vm1327, %v1347, %v1349
          %v1351 = vrot.slane %v1275, 1
          %v1352 = vsel %vm1327, %v1349, %v1351
          %v1353 = vrot.slane %v1276, 1
          %v1354 = vsel %vm1327, %v1351, %v1353
          %v1355 = vrot.slane %v1277, 1
          %v1356 = vsel %vm1327, %v1353, %v1355
          %v1357 = vrot.slane %v1278, 1
          %v1358 = vsel %vm1327, %v1355, %v1357
          %v1359 = vrot.slane %v1279, 1
          %v1360 = vsel %vm1327, %v1357, %v1359
          %v1361 = vrot.slane %v1280, 1
          %v1362 = vsel %vm1327, %v1359, %v1361
          %v1363 = vrot.slane %v1281, 1
          %v1364 = vsel %vm1327, %v1361, %v1363
          %v1365 = vrot.slane %v1282, 1
          %v1366 = vsel %vm1327, %v1363, %v1365
          %v1367 = vrot.slane %v1283, 1
          %v1368 = vsel %vm1327, %v1365, %v1367
          %v1369 = vrot.slane %v1284, 1
          %v1370 = vsel %vm1327, %v1367, %v1369
          %v1371 = vrot.slane %v1285, 1
          %v1372 = vsel %vm1327, %v1369, %v1371
          %v1373 = vrot.slane %v1286, 1
          %v1374 = vsel %vm1327, %v1371, %v1373
          %v1375 = vrot.slane %v1287, 1
          %v1376 = vsel %vm1327, %v1373, %v1375
          %v1377 = vrot.slane %v1288, 1
          %v1378 = vsel %vm1327, %v1375, %v1377
          %v1379 = vrot.slane %v1289, 1
          %v1380 = vsel %vm1327, %v1377, %v1379
          %v1381 = vrot.slane %v1290, 1
          %v1382 = vsel %vm1327, %v1379, %v1381
          %v1383 = vrot.slane %v1291, 1
          %v1384 = vsel %vm1327, %v1381, %v1383
          %v1385 = vrot.slane %v1292, 1
          %v1386 = vsel %vm1327, %v1383, %v1385
          %v1387 = vrot.slane %v1293, 1
          %v1388 = vsel %vm1327, %v1385, %v1387
          %v1389 = vrot.slane %v1294, 1
          %v1390 = vsel %vm1327, %v1387, %v1389
          %v1424 = vadd.f32 %v1194, %v1328
          %v1425 = vadd.f32 %v1195, %v1330
          %v1426 = vadd.f32 %v1196, %v1332
          %v1427 = vadd.f32 %v1197, %v1334
          %v1428 = vadd.f32 %v1198, %v1336
          %v1429 = vadd.f32 %v1199, %v1338
          %v1430 = vadd.f32 %v1200, %v1340
          %v1431 = vadd.f32 %v1201, %v1342
          %v1432 = vadd.f32 %v1202, %v1344
          %v1433 = vadd.f32 %v1203, %v1346
          %v1434 = vadd.f32 %v1204, %v1348
          %v1435 = vadd.f32 %v1205, %v1350
          %v1436 = vadd.f32 %v1206, %v1352
          %v1437 = vadd.f32 %v1207, %v1354
          %v1438 = vadd.f32 %v1208, %v1356
          %v1439 = vadd.f32 %v1209, %v1358
          %v1440 = vadd.f32 %v1210, %v1360
          %v1441 = vadd.f32 %v1211, %v1362
          %v1442 = vadd.f32 %v1212, %v1364
          %v1443 = vadd.f32 %v1213, %v1366
          %v1444 = vadd.f32 %v1214, %v1368
          %v1445 = vadd.f32 %v1215, %v1370
          %v1446 = vadd.f32 %v1216, %v1372
          %v1447 = vadd.f32 %v1217, %v1374
          %v1448 = vadd.f32 %v1218, %v1376
          %v1449 = vadd.f32 %v1219, %v1378
          %v1450 = vadd.f32 %v1220, %v1380
          %v1451 = vadd.f32 %v1221, %v1382
          %v1452 = vadd.f32 %v1222, %v1384
          %v1453 = vadd.f32 %v1223, %v1386
          %v1454 = vadd.f32 %v1224, %v1388
          %v1455 = vadd.f32 %v1225, %v1390
          %v1456 = vadd.f32 %v1226, %v1389
          %v1457 = vld [vmem:[#allocation2 + $0x8] sm:$0xff]
          %v1458 = vld [vmem:[#allocation2 + $0x10] sm:$0xff]
          %v1459 = vld [vmem:[#allocation2 + $0x18] sm:$0xff]
          %v1460 = vld [vmem:[#allocation2 + $0x20] sm:$0xff]
          %v1461 = vld [vmem:[#allocation2 + $0x28] sm:$0xff]
          %v1462 = vld [vmem:[#allocation2 + $0x30] sm:$0xff]
          %v1463 = vld [vmem:[#allocation2 + $0x38] sm:$0xff]
          %v1464 = vld [vmem:[#allocation2 + $0x40] sm:$0xff]
          %v1465 = vld [vmem:[#allocation2 + $0x48] sm:$0xff]
          %v1466 = vld [vmem:[#allocation2 + $0x50] sm:$0xff]
          %v1467 = vld [vmem:[#allocation2 + $0x58] sm:$0xff]
          %v1468 = vld [vmem:[#allocation2 + $0x60] sm:$0xff]
          %v1469 = vld [vmem:[#allocation2 + $0x68] sm:$0xff]
          %v1470 = vld [vmem:[#allocation2 + $0x70] sm:$0xff]
          %v1471 = vld [vmem:[#allocation2 + $0x78] sm:$0xff]
          %v1472 = vld [vmem:[#allocation2 + $0x80] sm:$0xff]
          %v1473 = vld [vmem:[#allocation2 + $0x88] sm:$0x1]
          %v1474 = vunpack.c.l.bf16 %v1457
          %v1475 = vunpack.c.h.bf16 %v1457
          %v1476 = vunpack.c.l.bf16 %v1458
          %v1477 = vunpack.c.h.bf16 %v1458
          %v1478 = vunpack.c.l.bf16 %v1459
          %v1479 = vunpack.c.h.bf16 %v1459
          %v1480 = vunpack.c.l.bf16 %v1460
          %v1481 = vunpack.c.h.bf16 %v1460
          %v1482 = vunpack.c.l.bf16 %v1461
          %v1483 = vunpack.c.h.bf16 %v1461
          %v1484 = vunpack.c.l.bf16 %v1462
          %v1485 = vunpack.c.h.bf16 %v1462
          %v1486 = vunpack.c.l.bf16 %v1463
          %v1487 = vunpack.c.h.bf16 %v1463
          %v1488 = vunpack.c.l.bf16 %v1464
          %v1489 = vunpack.c.h.bf16 %v1464
          %v1490 = vunpack.c.l.bf16 %v1465
          %v1491 = vunpack.c.h.bf16 %v1465
          %v1492 = vunpack.c.l.bf16 %v1466
          %v1493 = vunpack.c.h.bf16 %v1466
          %v1494 = vunpack.c.l.bf16 %v1467
          %v1495 = vunpack.c.h.bf16 %v1467
          %v1496 = vunpack.c.l.bf16 %v1468
          %v1497 = vunpack.c.h.bf16 %v1468
          %v1498 = vunpack.c.l.bf16 %v1469
          %v1499 = vunpack.c.h.bf16 %v1469
          %v1500 = vunpack.c.l.bf16 %v1470
          %v1501 = vunpack.c.h.bf16 %v1470
          %v1502 = vunpack.c.l.bf16 %v1471
          %v1503 = vunpack.c.h.bf16 %v1471
          %v1504 = vunpack.c.l.bf16 %v1472
          %v1505 = vunpack.c.h.bf16 %v1472
          %v1506 = vunpack.c.l.bf16 %v1473
          %v1507 = vlaneseq
          %v1508 = vshrl.u32 %v1507, 7
          %v1509 = vsub.s32 2, %v1508
          %v1510 = vrot.slane %v1071, %v1509
          %v1511 = vmul.f32 %v1474, %v1510
          %v1512 = vmul.f32 %v1475, %v1510
          %v1513 = vmul.f32 %v1476, %v1510
          %v1514 = vmul.f32 %v1477, %v1510
          %v1515 = vmul.f32 %v1478, %v1510
          %v1516 = vmul.f32 %v1479, %v1510
          %v1517 = vmul.f32 %v1480, %v1510
          %v1518 = vmul.f32 %v1481, %v1510
          %v1519 = vmul.f32 %v1482, %v1510
          %v1520 = vmul.f32 %v1483, %v1510
          %v1521 = vmul.f32 %v1484, %v1510
          %v1522 = vmul.f32 %v1485, %v1510
          %v1523 = vmul.f32 %v1486, %v1510
          %v1524 = vmul.f32 %v1487, %v1510
          %v1525 = vmul.f32 %v1488, %v1510
          %v1526 = vmul.f32 %v1489, %v1510
          %v1527 = vmul.f32 %v1490, %v1510
          %v1528 = vmul.f32 %v1491, %v1510
          %v1529 = vmul.f32 %v1492, %v1510
          %v1530 = vmul.f32 %v1493, %v1510
          %v1531 = vmul.f32 %v1494, %v1510
          %v1532 = vmul.f32 %v1495, %v1510
          %v1533 = vmul.f32 %v1496, %v1510
          %v1534 = vmul.f32 %v1497, %v1510
          %v1535 = vmul.f32 %v1498, %v1510
          %v1536 = vmul.f32 %v1499, %v1510
          %v1537 = vmul.f32 %v1500, %v1510
          %v1538 = vmul.f32 %v1501, %v1510
          %v1539 = vmul.f32 %v1502, %v1510
          %v1540 = vmul.f32 %v1503, %v1510
          %v1541 = vmul.f32 %v1504, %v1510
          %v1542 = vmul.f32 %v1505, %v1510
          %v1543 = vmul.f32 %v1506, %v1510
          %vm1577 = vcmask 1045504
          %v1578 = vrot.slane %v1511, 2
          %v1579 = vrot.slane %v1512, 2
          %v1580 = vsel %vm1577, %v1578, %v1579
          %v1581 = vrot.slane %v1513, 2
          %v1582 = vsel %vm1577, %v1579, %v1581
          %v1583 = vrot.slane %v1514, 2
          %v1584 = vsel %vm1577, %v1581, %v1583
          %v1585 = vrot.slane %v1515, 2
          %v1586 = vsel %vm1577, %v1583, %v1585
          %v1587 = vrot.slane %v1516, 2
          %v1588 = vsel %vm1577, %v1585, %v1587
          %v1589 = vrot.slane %v1517, 2
          %v1590 = vsel %vm1577, %v1587, %v1589
          %v1591 = vrot.slane %v1518, 2
          %v1592 = vsel %vm1577, %v1589, %v1591
          %v1593 = vrot.slane %v1519, 2
          %v1594 = vsel %vm1577, %v1591, %v1593
          %v1595 = vrot.slane %v1520, 2
          %v1596 = vsel %vm1577, %v1593, %v1595
          %v1597 = vrot.slane %v1521, 2
          %v1598 = vsel %vm1577, %v1595, %v1597
          %v1599 = vrot.slane %v1522, 2
          %v1600 = vsel %vm1577, %v1597, %v1599
          %v1601 = vrot.slane %v1523, 2
          %v1602 = vsel %vm1577, %v1599, %v1601
          %v1603 = vrot.slane %v1524, 2
          %v1604 = vsel %vm1577, %v1601, %v1603
          %v1605 = vrot.slane %v1525, 2
          %v1606 = vsel %vm1577, %v1603, %v1605
          %v1607 = vrot.slane %v1526, 2
          %v1608 = vsel %vm1577, %v1605, %v1607
          %v1609 = vrot.slane %v1527, 2
          %v1610 = vsel %vm1577, %v1607, %v1609
          %v1611 = vrot.slane %v1528, 2
          %v1612 = vsel %vm1577, %v1609, %v1611
          %v1613 = vrot.slane %v1529, 2
          %v1614 = vsel %vm1577, %v1611, %v1613
          %v1615 = vrot.slane %v1530, 2
          %v1616 = vsel %vm1577, %v1613, %v1615
          %v1617 = vrot.slane %v1531, 2
          %v1618 = vsel %vm1577, %v1615, %v1617
          %v1619 = vrot.slane %v1532, 2
          %v1620 = vsel %vm1577, %v1617, %v1619
          %v1621 = vrot.slane %v1533, 2
          %v1622 = vsel %vm1577, %v1619, %v1621
          %v1623 = vrot.slane %v1534, 2
          %v1624 = vsel %vm1577, %v1621, %v1623
          %v1625 = vrot.slane %v1535, 2
          %v1626 = vsel %vm1577, %v1623, %v1625
          %v1627 = vrot.slane %v1536, 2
          %v1628 = vsel %vm1577, %v1625, %v1627
          %v1629 = vrot.slane %v1537, 2
          %v1630 = vsel %vm1577, %v1627, %v1629
          %v1631 = vrot.slane %v1538, 2
          %v1632 = vsel %vm1577, %v1629, %v1631
          %v1633 = vrot.slane %v1539, 2
          %v1634 = vsel %vm1577, %v1631, %v1633
          %v1635 = vrot.slane %v1540, 2
          %v1636 = vsel %vm1577, %v1633, %v1635
          %v1637 = vrot.slane %v1541, 2
          %v1638 = vsel %vm1577, %v1635, %v1637
          %v1639 = vrot.slane %v1542, 2
          %v1640 = vsel %vm1577, %v1637, %v1639
          %v1641 = vrot.slane %v1543, 2
          %v1642 = vsel %vm1577, %v1639, %v1641
          %v1676 = vadd.f32 %v1424, %v1578
          %v1677 = vadd.f32 %v1425, %v1580
          %v1678 = vadd.f32 %v1426, %v1582
          %v1679 = vadd.f32 %v1427, %v1584
          %v1680 = vadd.f32 %v1428, %v1586
          %v1681 = vadd.f32 %v1429, %v1588
          %v1682 = vadd.f32 %v1430, %v1590
          %v1683 = vadd.f32 %v1431, %v1592
          %v1684 = vadd.f32 %v1432, %v1594
          %v1685 = vadd.f32 %v1433, %v1596
          %v1686 = vadd.f32 %v1434, %v1598
          %v1687 = vadd.f32 %v1435, %v1600
          %v1688 = vadd.f32 %v1436, %v1602
          %v1689 = vadd.f32 %v1437, %v1604
          %v1690 = vadd.f32 %v1438, %v1606
          %v1691 = vadd.f32 %v1439, %v1608
          %v1692 = vadd.f32 %v1440, %v1610
          %v1693 = vadd.f32 %v1441, %v1612
          %v1694 = vadd.f32 %v1442, %v1614
          %v1695 = vadd.f32 %v1443, %v1616
          %v1696 = vadd.f32 %v1444, %v1618
          %v1697 = vadd.f32 %v1445, %v1620
          %v1698 = vadd.f32 %v1446, %v1622
          %v1699 = vadd.f32 %v1447, %v1624
          %v1700 = vadd.f32 %v1448, %v1626
          %v1701 = vadd.f32 %v1449, %v1628
          %v1702 = vadd.f32 %v1450, %v1630
          %v1703 = vadd.f32 %v1451, %v1632
          %v1704 = vadd.f32 %v1452, %v1634
          %v1705 = vadd.f32 %v1453, %v1636
          %v1706 = vadd.f32 %v1454, %v1638
          %v1707 = vadd.f32 %v1455, %v1640
          %v1708 = vadd.f32 %v1456, %v1642
          %v1709 = vld [vmem:[%s4] sm:$0x1]
          %v1711 = vlaneseq
          %v1712 = vshrl.u32 %v1711, 7
          %v1713 = vsub.s32 0, %v1712
          %v1714 = vrot.slane %v1709, %v1713
          %v1716 = vadd.f32 %v1676, %v1714
          %v1717 = vadd.f32 %v1677, %v1714
          %v1718 = vadd.f32 %v1678, %v1714
          %v1719 = vadd.f32 %v1679, %v1714
          %v1720 = vadd.f32 %v1680, %v1714
          %v1721 = vadd.f32 %v1681, %v1714
          %v1722 = vadd.f32 %v1682, %v1714
          %v1723 = vadd.f32 %v1683, %v1714
          %v1724 = vadd.f32 %v1684, %v1714
          %v1725 = vadd.f32 %v1685, %v1714
          %v1726 = vadd.f32 %v1686, %v1714
          %v1727 = vadd.f32 %v1687, %v1714
          %v1728 = vadd.f32 %v1688, %v1714
          %v1729 = vadd.f32 %v1689, %v1714
          %v1730 = vadd.f32 %v1690, %v1714
          %v1731 = vadd.f32 %v1691, %v1714
          %v1732 = vadd.f32 %v1692, %v1714
          %v1733 = vadd.f32 %v1693, %v1714
          %v1734 = vadd.f32 %v1694, %v1714
          %v1735 = vadd.f32 %v1695, %v1714
          %v1736 = vadd.f32 %v1696, %v1714
          %v1737 = vadd.f32 %v1697, %v1714
          %v1738 = vadd.f32 %v1698, %v1714
          %v1739 = vadd.f32 %v1699, %v1714
          %v1740 = vadd.f32 %v1700, %v1714
          %v1741 = vadd.f32 %v1701, %v1714
          %v1742 = vadd.f32 %v1702, %v1714
          %v1743 = vadd.f32 %v1703, %v1714
          %v1744 = vadd.f32 %v1704, %v1714
          %v1745 = vadd.f32 %v1705, %v1714
          %v1746 = vadd.f32 %v1706, %v1714
          %v1747 = vadd.f32 %v1707, %v1714
          %v1748 = vadd.f32 %v1708, %v1714
          %v1749 = vpack.c.bf16 %v1717, %v1716
          %v1750 = vpack.c.bf16 %v1719, %v1718
          %v1751 = vpack.c.bf16 %v1721, %v1720
          %v1752 = vpack.c.bf16 %v1723, %v1722
          %v1753 = vpack.c.bf16 %v1725, %v1724
          %v1754 = vpack.c.bf16 %v1727, %v1726
          %v1755 = vpack.c.bf16 %v1729, %v1728
          %v1756 = vpack.c.bf16 %v1731, %v1730
          %v1757 = vpack.c.bf16 %v1733, %v1732
          %v1758 = vpack.c.bf16 %v1735, %v1734
          %v1759 = vpack.c.bf16 %v1737, %v1736
          %v1760 = vpack.c.bf16 %v1739, %v1738
          %v1761 = vpack.c.bf16 %v1741, %v1740
          %v1762 = vpack.c.bf16 %v1743, %v1742
          %v1763 = vpack.c.bf16 %v1745, %v1744
          %v1764 = vpack.c.bf16 %v1747, %v1746
          %v1765 = vpack.c.bf16 %v1748, %v1748
          %vm1766 = vsmask.f32 4352
          %v1768 = vshrl.u32 %v1749, 16
          %v1770 = vrot.slane %v1768, 3
          %v1771 = vshll.u32 %v1749, 16
          %v1773 = vrot.slane %v1771, 4
          %v1774 = vor.u32 %v1770, %v1773
          %v1776 = vshrl.u32 %v1750, 16
          %v1778 = vrot.slane %v1776, 3
          %v1779 = vshll.u32 %v1750, 16
          %v1781 = vrot.slane %v1779, 4
          %v1782 = vor.u32 %v1778, %v1781
          %v1783 = vsel %vm1766, %v1774, %v1782
          %v1785 = vshrl.u32 %v1751, 16
          %v1787 = vrot.slane %v1785, 3
          %v1788 = vshll.u32 %v1751, 16
          %v1790 = vrot.slane %v1788, 4
          %v1791 = vor.u32 %v1787, %v1790
          %v1792 = vsel %vm1766, %v1782, %v1791
          %v1794 = vshrl.u32 %v1752, 16
          %v1796 = vrot.slane %v1794, 3
          %v1797 = vshll.u32 %v1752, 16
          %v1799 = vrot.slane %v1797, 4
          %v1800 = vor.u32 %v1796, %v1799
          %v1801 = vsel %vm1766, %v1791, %v1800
          %v1803 = vshrl.u32 %v1753, 16
          %v1805 = vrot.slane %v1803, 3
          %v1806 = vshll.u32 %v1753, 16
          %v1808 = vrot.slane %v1806, 4
          %v1809 = vor.u32 %v1805, %v1808
          %v1810 = vsel %vm1766, %v1800, %v1809
          %v1812 = vshrl.u32 %v1754, 16
          %v1814 = vrot.slane %v1812, 3
          %v1815 = vshll.u32 %v1754, 16
          %v1817 = vrot.slane %v1815, 4
          %v1818 = vor.u32 %v1814, %v1817
          %v1819 = vsel %vm1766, %v1809, %v1818
          %v1821 = vshrl.u32 %v1755, 16
          %v1823 = vrot.slane %v1821, 3
          %v1824 = vshll.u32 %v1755, 16
          %v1826 = vrot.slane %v1824, 4
          %v1827 = vor.u32 %v1823, %v1826
          %v1828 = vsel %vm1766, %v1818, %v1827
          %v1830 = vshrl.u32 %v1756, 16
          %v1832 = vrot.slane %v1830, 3
          %v1833 = vshll.u32 %v1756, 16
          %v1835 = vrot.slane %v1833, 4
          %v1836 = vor.u32 %v1832, %v1835
          %v1837 = vsel %vm1766, %v1827, %v1836
          %v1839 = vshrl.u32 %v1757, 16
          %v1841 = vrot.slane %v1839, 3
          %v1842 = vshll.u32 %v1757, 16
          %v1844 = vrot.slane %v1842, 4
          %v1845 = vor.u32 %v1841, %v1844
          %v1846 = vsel %vm1766, %v1836, %v1845
          %v1848 = vshrl.u32 %v1758, 16
          %v1850 = vrot.slane %v1848, 3
          %v1851 = vshll.u32 %v1758, 16
          %v1853 = vrot.slane %v1851, 4
          %v1854 = vor.u32 %v1850, %v1853
          %v1855 = vsel %vm1766, %v1845, %v1854
          %v1857 = vshrl.u32 %v1759, 16
          %v1859 = vrot.slane %v1857, 3
          %v1860 = vshll.u32 %v1759, 16
          %v1862 = vrot.slane %v1860, 4
          %v1863 = vor.u32 %v1859, %v1862
          %v1864 = vsel %vm1766, %v1854, %v1863
          %v1866 = vshrl.u32 %v1760, 16
          %v1868 = vrot.slane %v1866, 3
          %v1869 = vshll.u32 %v1760, 16
          %v1871 = vrot.slane %v1869, 4
          %v1872 = vor.u32 %v1868, %v1871
          %v1873 = vsel %vm1766, %v1863, %v1872
          %v1875 = vshrl.u32 %v1761, 16
          %v1877 = vrot.slane %v1875, 3
          %v1878 = vshll.u32 %v1761, 16
          %v1880 = vrot.slane %v1878, 4
          %v1881 = vor.u32 %v1877, %v1880
          %v1882 = vsel %vm1766, %v1872, %v1881
          %v1884 = vshrl.u32 %v1762, 16
          %v1886 = vrot.slane %v1884, 3
          %v1887 = vshll.u32 %v1762, 16
          %v1889 = vrot.slane %v1887, 4
          %v1890 = vor.u32 %v1886, %v1889
          %v1891 = vsel %vm1766, %v1881, %v1890
          %v1893 = vshrl.u32 %v1763, 16
          %v1895 = vrot.slane %v1893, 3
          %v1896 = vshll.u32 %v1763, 16
          %v1898 = vrot.slane %v1896, 4
          %v1899 = vor.u32 %v1895, %v1898
          %v1900 = vsel %vm1766, %v1890, %v1899
          %v1902 = vshrl.u32 %v1764, 16
          %v1904 = vrot.slane %v1902, 3
          %v1905 = vshll.u32 %v1764, 16
          %v1907 = vrot.slane %v1905, 4
          %v1908 = vor.u32 %v1904, %v1907
          %v1909 = vsel %vm1766, %v1899, %v1908
          %v1911 = vshrl.u32 %v1765, 16
          %v1913 = vrot.slane %v1911, 3
          %v1914 = vshll.u32 %v1765, 16
          %v1916 = vrot.slane %v1914, 4
          %v1917 = vor.u32 %v1913, %v1916
          %v1918 = vsel %vm1766, %v1908, %v1917
          %1935 = vst [vmem:[#allocation3] sm:$0xff] %v1783
          %1936 = vst [vmem:[#allocation3 + $0x8] sm:$0xff] %v1792
          %1937 = vst [vmem:[#allocation3 + $0x10] sm:$0xff] %v1801
          %1938 = vst [vmem:[#allocation3 + $0x18] sm:$0xff] %v1810
          %1939 = vst [vmem:[#allocation3 + $0x20] sm:$0xff] %v1819
          %1940 = vst [vmem:[#allocation3 + $0x28] sm:$0xff] %v1828
          %1941 = vst [vmem:[#allocation3 + $0x30] sm:$0xff] %v1837
          %1942 = vst [vmem:[#allocation3 + $0x38] sm:$0xff] %v1846
          %1943 = vst [vmem:[#allocation3 + $0x40] sm:$0xff] %v1855
          %1944 = vst [vmem:[#allocation3 + $0x48] sm:$0xff] %v1864
          %1945 = vst [vmem:[#allocation3 + $0x50] sm:$0xff] %v1873
          %1946 = vst [vmem:[#allocation3 + $0x58] sm:$0xff] %v1882
          %1947 = vst [vmem:[#allocation3 + $0x60] sm:$0xff] %v1891
          %1948 = vst [vmem:[#allocation3 + $0x68] sm:$0xff] %v1900
          %1949 = vst [vmem:[#allocation3 + $0x70] sm:$0xff] %v1909
          %1950 = vst [vmem:[#allocation3 + $0x78] sm:$0xff] %v1918
        $region52: #{tpu_custom_call.1} parent=47 // pred_fallthru
          _
        %v1951 = vld [vmem:[#allocation3] sm:$0xff]
        %v1952 = vld [vmem:[#allocation3 + $0x8] sm:$0xff]
        %v1953 = vld [vmem:[#allocation3 + $0x10] sm:$0xff]
        %v1954 = vld [vmem:[#allocation3 + $0x18] sm:$0xff]
        %v1955 = vld [vmem:[#allocation3 + $0x20] sm:$0xff]
        %v1956 = vld [vmem:[#allocation3 + $0x28] sm:$0xff]
        %v1957 = vld [vmem:[#allocation3 + $0x30] sm:$0xff]
        %v1958 = vld [vmem:[#allocation3 + $0x38] sm:$0xff]
        %v1959 = vld [vmem:[#allocation3 + $0x40] sm:$0xff]
        %v1960 = vld [vmem:[#allocation3 + $0x48] sm:$0xff]
        %v1961 = vld [vmem:[#allocation3 + $0x50] sm:$0xff]
        %v1962 = vld [vmem:[#allocation3 + $0x58] sm:$0xff]
        %v1963 = vld [vmem:[#allocation3 + $0x60] sm:$0xff]
        %v1964 = vld [vmem:[#allocation3 + $0x68] sm:$0xff]
        %v1965 = vld [vmem:[#allocation3 + $0x70] sm:$0xff]
        %v1966 = vld [vmem:[#allocation3 + $0x78] sm:$0xff]
        %v1967 = vld [vmem:[%s501] sm:$0xf]
        %v1968 = vld [vmem:[%s501 + $0x4] sm:$0xf]
        %v1969 = vld [vmem:[%s501 + $0x8] sm:$0xf]
        %v1970 = vld [vmem:[%s501 + $0xc] sm:$0xf]
        %v1971 = vld [vmem:[%s501 + $0x10] sm:$0xf]
        %v1972 = vld [vmem:[%s501 + $0x14] sm:$0xf]
        %v1973 = vld [vmem:[%s501 + $0x18] sm:$0xf]
        %v1974 = vld [vmem:[%s501 + $0x1c] sm:$0xf]
        %v1975 = vld [vmem:[%s501 + $0x20] sm:$0xf]
        %v1976 = vld [vmem:[%s501 + $0x24] sm:$0xf]
        %v1977 = vld [vmem:[%s501 + $0x28] sm:$0xf]
        %v1978 = vld [vmem:[%s501 + $0x2c] sm:$0xf]
        %v1979 = vld [vmem:[%s501 + $0x30] sm:$0xf]
        %v1980 = vld [vmem:[%s501 + $0x34] sm:$0xf]
        %v1981 = vld [vmem:[%s501 + $0x38] sm:$0xf]
        %v1982 = vld [vmem:[%s501 + $0x3c] sm:$0xf]
        %v1983 = vld [vmem:[%s504] sm:$0x1]
        %v1985 = vlaneseq
        %v1986 = vshrl.u32 %v1985, 7
        %v1987 = vsub.s32 0, %v1986
        %v1988 = vrot.slane %v1983, %v1987
        %v2006 = vunpack.c.l.b16 %v1967
        %v2007 = vunpack.c.l.b16 %v1968
        %v2008 = vunpack.c.l.b16 %v1969
        %v2009 = vunpack.c.l.b16 %v1970
        %v2010 = vunpack.c.l.b16 %v1971
        %v2011 = vunpack.c.l.b16 %v1972
        %v2012 = vunpack.c.l.b16 %v1973
        %v2013 = vunpack.c.l.b16 %v1974
        %v2014 = vunpack.c.l.b16 %v1975
        %v2015 = vunpack.c.l.b16 %v1976
        %v2016 = vunpack.c.l.b16 %v1977
        %v2017 = vunpack.c.l.b16 %v1978
        %v2018 = vunpack.c.l.b16 %v1979
        %v2019 = vunpack.c.l.b16 %v1980
        %v2020 = vunpack.c.l.b16 %v1981
        %v2021 = vunpack.c.l.b16 %v1982
        %v2022 = vpack.c.b16 %v2007, %v2006
        %v2023 = vpack.c.b16 %v2009, %v2008
        %v2024 = vpack.c.b16 %v2011, %v2010
        %v2025 = vpack.c.b16 %v2013, %v2012
        %v2026 = vpack.c.b16 %v2015, %v2014
        %v2027 = vpack.c.b16 %v2017, %v2016
        %v2028 = vpack.c.b16 %v2019, %v2018
        %v2029 = vpack.c.b16 %v2021, %v2020
        %2038 = vmatprep.subr.bf16.mxu0 0
        %2039 = vmatpush1.bf16.msra.mxu0 %v2022
        %2040 = vmatprep.subr.bf16.mxu0 0
        %2041 = vmatpush1.bf16.msra.mxu0 %v2023
        %2042 = vmatprep.subr.bf16.mxu0 0
        %2043 = vmatpush1.bf16.msra.mxu0 %v2024
        %2044 = vmatprep.subr.bf16.mxu0 0
        %2045 = vmatpush1.bf16.msra.mxu0 %v2025
        %2046 = vmatprep.subr.bf16.mxu0 0
        %2047 = vmatpush1.bf16.msra.mxu0 %v2026
        %2048 = vmatprep.subr.bf16.mxu0 0
        %2049 = vmatpush1.bf16.msra.mxu0 %v2027
        %2050 = vmatprep.subr.bf16.mxu0 0
        %2051 = vmatpush1.bf16.msra.mxu0 %v2028
        %2052 = vmatprep.subr.bf16.mxu0 0
        %2053 = vmatpush1.bf16.msra.mxu0 %v2029
        %2054 = vmatprep.subr.bf16.mxu0 0
        %2055 = vmatpush1.bf16.msra.mxu0 0
        %2056 = vmatprep.subr.bf16.mxu0 0
        %2057 = vmatpush1.bf16.msra.mxu0 0
        %2058 = vmatprep.subr.bf16.mxu0 0
        %2059 = vmatpush1.bf16.msra.mxu0 0
        %2060 = vmatprep.subr.bf16.mxu0 0
        %2061 = vmatpush1.bf16.msra.mxu0 0
        %2062 = vmatprep.subr.bf16.mxu0 0
        %2063 = vmatpush1.bf16.msra.mxu0 0
        %2064 = vmatprep.subr.bf16.mxu0 0
        %2065 = vmatpush1.bf16.msra.mxu0 0
        %2066 = vmatprep.subr.bf16.mxu0 0
        %2067 = vmatpush1.bf16.msra.mxu0 0
        %2068 = vmatprep.subr.bf16.mxu0 0
        %2069 = vmatpush1.bf16.msra.mxu0 0
        %2070 = vmatprep.mubr.bf16.mxu0 0
        %2071 = vmatmul.mubr.bf16.gmra.mrb[0].mxu0 %v1951
        %v2072 = vpop.f32.mrb[0].mxu0
        %v2073 = vadd.f32 %v1988, %v2072
        %v2074 = vpop.f32.mrb[0].mxu0
        %v2075 = vpop.f32.mrb[0].mxu0
        %v2076 = vadd.f32 %v1988, %v2075
        %v2077 = vpop.f32.mrb[0].mxu0
        %2078 = vmatprep.mubr.bf16.mxu0 0
        %2079 = vmatmul.mubr.bf16.gmra.mrb[0].mxu0 %v1952
        %v2080 = vpop.f32.mrb[0].mxu0
        %v2081 = vadd.f32 %v1988, %v2080
        %v2082 = vpop.f32.mrb[0].mxu0
        %v2083 = vpop.f32.mrb[0].mxu0
        %v2084 = vadd.f32 %v1988, %v2083
        %v2085 = vpop.f32.mrb[0].mxu0
        %2086 = vmatprep.mubr.bf16.mxu0 0
        %2087 = vmatmul.mubr.bf16.gmra.mrb[0].mxu0 %v1953
        %v2088 = vpop.f32.mrb[0].mxu0
        %v2089 = vadd.f32 %v1988, %v2088
        %v2090 = vpop.f32.mrb[0].mxu0
        %v2091 = vpop.f32.mrb[0].mxu0
        %v2092 = vadd.f32 %v1988, %v2091
        %v2093 = vpop.f32.mrb[0].mxu0
        %2094 = vmatprep.mubr.bf16.mxu0 0
        %2095 = vmatmul.mubr.bf16.gmra.mrb[0].mxu0 %v1954
        %v2096 = vpop.f32.mrb[0].mxu0
        %v2097 = vadd.f32 %v1988, %v2096
        %v2098 = vpop.f32.mrb[0].mxu0
        %v2099 = vpop.f32.mrb[0].mxu0
        %v2100 = vadd.f32 %v1988, %v2099
        %v2101 = vpop.f32.mrb[0].mxu0
        %2102 = vmatprep.mubr.bf16.mxu0 0
        %2103 = vmatmul.mubr.bf16.gmra.mrb[0].mxu0 %v1955
        %v2104 = vpop.f32.mrb[0].mxu0
        %v2105 = vadd.f32 %v1988, %v2104
        %v2106 = vpop.f32.mrb[0].mxu0
        %v2107 = vpop.f32.mrb[0].mxu0
        %v2108 = vadd.f32 %v1988, %v2107
        %v2109 = vpop.f32.mrb[0].mxu0
        %2110 = vmatprep.mubr.bf16.mxu0 0
        %2111 = vmatmul.mubr.bf16.gmra.mrb[0].mxu0 %v1956
        %v2112 = vpop.f32.mrb[0].mxu0
        %v2113 = vadd.f32 %v1988, %v2112
        %v2114 = vpop.f32.mrb[0].mxu0
        %v2115 = vpop.f32.mrb[0].mxu0
        %v2116 = vadd.f32 %v1988, %v2115
        %v2117 = vpop.f32.mrb[0].mxu0
        %2118 = vmatprep.mubr.bf16.mxu0 0
        %2119 = vmatmul.mubr.bf16.gmra.mrb[0].mxu0 %v1957
        %v2120 = vpop.f32.mrb[0].mxu0
        %v2121 = vadd.f32 %v1988, %v2120
        %v2122 = vpop.f32.mrb[0].mxu0
        %v2123 = vpop.f32.mrb[0].mxu0
        %v2124 = vadd.f32 %v1988, %v2123
        %v2125 = vpop.f32.mrb[0].mxu0
        %2126 = vmatprep.mubr.bf16.mxu0 0
        %2127 = vmatmul.mubr.bf16.gmra.mrb[0].mxu0 %v1958
        %v2128 = vpop.f32.mrb[0].mxu0
        %v2129 = vadd.f32 %v1988, %v2128
        %v2130 = vpop.f32.mrb[0].mxu0
        %v2131 = vpop.f32.mrb[0].mxu0
        %v2132 = vadd.f32 %v1988, %v2131
        %v2133 = vpop.f32.mrb[0].mxu0
        %2134 = vmatprep.mubr.bf16.mxu0 0
        %2135 = vmatmul.mubr.bf16.gmra.mrb[0].mxu0 %v1959
        %v2136 = vpop.f32.mrb[0].mxu0
        %v2137 = vadd.f32 %v1988, %v2136
        %v2138 = vpop.f32.mrb[0].mxu0
        %v2139 = vpop.f32.mrb[0].mxu0
        %v2140 = vadd.f32 %v1988, %v2139
        %v2141 = vpop.f32.mrb[0].mxu0
        %2142 = vmatprep.mubr.bf16.mxu0 0
        %2143 = vmatmul.mubr.bf16.gmra.mrb[0].mxu0 %v1960
        %v2144 = vpop.f32.mrb[0].mxu0
        %v2145 = vadd.f32 %v1988, %v2144
        %v2146 = vpop.f32.mrb[0].mxu0
        %v2147 = vpop.f32.mrb[0].mxu0
        %v2148 = vadd.f32 %v1988, %v2147
        %v2149 = vpop.f32.mrb[0].mxu0
        %2150 = vmatprep.mubr.bf16.mxu0 0
        %2151 = vmatmul.mubr.bf16.gmra.mrb[0].mxu0 %v1961
        %v2152 = vpop.f32.mrb[0].mxu0
        %v2153 = vadd.f32 %v1988, %v2152
        %v2154 = vpop.f32.mrb[0].mxu0
        %v2155 = vpop.f32.mrb[0].mxu0
        %v2156 = vadd.f32 %v1988, %v2155
        %v2157 = vpop.f32.mrb[0].mxu0
        %2158 = vmatprep.mubr.bf16.mxu0 0
        %2159 = vmatmul.mubr.bf16.gmra.mrb[0].mxu0 %v1962
        %v2160 = vpop.f32.mrb[0].mxu0
        %v2161 = vadd.f32 %v1988, %v2160
        %v2162 = vpop.f32.mrb[0].mxu0
        %v2163 = vpop.f32.mrb[0].mxu0
        %v2164 = vadd.f32 %v1988, %v2163
        %v2165 = vpop.f32.mrb[0].mxu0
        %2166 = vmatprep.mubr.bf16.mxu0 0
        %2167 = vmatmul.mubr.bf16.gmra.mrb[0].mxu0 %v1963
        %v2168 = vpop.f32.mrb[0].mxu0
        %v2169 = vadd.f32 %v1988, %v2168
        %v2170 = vpop.f32.mrb[0].mxu0
        %v2171 = vpop.f32.mrb[0].mxu0
        %v2172 = vadd.f32 %v1988, %v2171
        %v2173 = vpop.f32.mrb[0].mxu0
        %2174 = vmatprep.mubr.bf16.mxu0 0
        %2175 = vmatmul.mubr.bf16.gmra.mrb[0].mxu0 %v1964
        %v2176 = vpop.f32.mrb[0].mxu0
        %v2177 = vadd.f32 %v1988, %v2176
        %v2178 = vpop.f32.mrb[0].mxu0
        %v2179 = vpop.f32.mrb[0].mxu0
        %v2180 = vadd.f32 %v1988, %v2179
        %v2181 = vpop.f32.mrb[0].mxu0
        %2182 = vmatprep.mubr.bf16.mxu0 0
        %2183 = vmatmul.mubr.bf16.gmra.mrb[0].mxu0 %v1965
        %v2184 = vpop.f32.mrb[0].mxu0
        %v2185 = vadd.f32 %v1988, %v2184
        %v2186 = vpop.f32.mrb[0].mxu0
        %v2187 = vpop.f32.mrb[0].mxu0
        %v2188 = vadd.f32 %v1988, %v2187
        %v2189 = vpop.f32.mrb[0].mxu0
        %2190 = vmatprep.mubr.bf16.mxu0 0
        %2191 = vmatmul.mubr.bf16.gmra.mrb[0].mxu0 %v1966
        %v2192 = vpop.f32.mrb[0].mxu0
        %v2193 = vadd.f32 %v1988, %v2192
        %v2194 = vpop.f32.mrb[0].mxu0
        %v2195 = vpop.f32.mrb[0].mxu0
        %v2196 = vadd.f32 %v1988, %v2195
        %v2197 = vpop.f32.mrb[0].mxu0
        %2198 = vdwg.mxu0
        %2199 = vst [vmem:[%s439] sm:$0xff] %v2073
        %2200 = vst [vmem:[%s439 + $0x8] sm:$0xff] %v2076
        %2201 = vst [vmem:[%s439 + $0x10] sm:$0xff] %v2081
        %2202 = vst [vmem:[%s439 + $0x18] sm:$0xff] %v2084
        %2203 = vst [vmem:[%s439 + $0x20] sm:$0xff] %v2089
        %2204 = vst [vmem:[%s439 + $0x28] sm:$0xff] %v2092
        %2205 = vst [vmem:[%s439 + $0x30] sm:$0xff] %v2097
        %2206 = vst [vmem:[%s439 + $0x38] sm:$0xff] %v2100
        %2207 = vst [vmem:[%s439 + $0x40] sm:$0xff] %v2105
        %2208 = vst [vmem:[%s439 + $0x48] sm:$0xff] %v2108
        %2209 = vst [vmem:[%s439 + $0x50] sm:$0xff] %v2113
        %2210 = vst [vmem:[%s439 + $0x58] sm:$0xff] %v2116
        %2211 = vst [vmem:[%s439 + $0x60] sm:$0xff] %v2121
        %2212 = vst [vmem:[%s439 + $0x68] sm:$0xff] %v2124
        %2213 = vst [vmem:[%s439 + $0x70] sm:$0xff] %v2129
        %2214 = vst [vmem:[%s439 + $0x78] sm:$0xff] %v2132
        %2215 = vst [vmem:[%s439 + $0x80] sm:$0xff] %v2137
        %2216 = vst [vmem:[%s439 + $0x88] sm:$0xff] %v2140
        %2217 = vst [vmem:[%s439 + $0x90] sm:$0xff] %v2145
        %2218 = vst [vmem:[%s439 + $0x98] sm:$0xff] %v2148
        %2219 = vst [vmem:[%s439 + $0xa0] sm:$0xff] %v2153
        %2220 = vst [vmem:[%s439 + $0xa8] sm:$0xff] %v2156
        %2221 = vst [vmem:[%s439 + $0xb0] sm:$0xff] %v2161
        %2222 = vst [vmem:[%s439 + $0xb8] sm:$0xff] %v2164
        %2223 = vst [vmem:[%s439 + $0xc0] sm:$0xff] %v2169
        %2224 = vst [vmem:[%s439 + $0xc8] sm:$0xff] %v2172
        %2225 = vst [vmem:[%s439 + $0xd0] sm:$0xff] %v2177
        %2226 = vst [vmem:[%s439 + $0xd8] sm:$0xff] %v2180
        %2227 = vst [vmem:[%s439 + $0xe0] sm:$0xff] %v2185
        %2228 = vst [vmem:[%s439 + $0xe8] sm:$0xff] %v2188
        %2229 = vst [vmem:[%s439 + $0xf0] sm:$0xff] %v2193
        %2230 = vst [vmem:[%s439 + $0xf8] sm:$0xff] %v2196
        %s2231 = sand.u32 %s247, 1
        %s2232 = sand.u32 %s247, 1
        %s2233 = smul.addr %s2232, 256
        %s2234 = scalar_lea.vmem [#allocation4], %s2233
        // Predicated region
        $region61: #{tpu_custom_call.1} parent=47 // pred_check
          %p2235 = pneg %p257
        $region62: #{tpu_custom_call.1} parent=47 // pred_check_branch
          %2237 = sbr.rel (%p2235) target = $region64
        $region63: #{tpu_custom_call.1} parent=47 // pred_region
          %s2238 = smul.u32 32, %s24
          %s2239 = ssub.s32 38, %s2238
          %p2240 = scmp.lt.s32.totalorder %s2239, 32
          %s2241 = scalar_select %p2240, %s2239, 32
          %s2242 = smul.u32 128, %s2241
          %p2243 = scmp.ne.s32.totalorder 0, %s2242
          %s2244 = sadd.s32 %s25, %s2238
          %s2245 = smul.addr %s23, 38
          %s2246 = sadd.s32 %s2244, %s2245
          %s2247 = smul.addr %s2246, 8
          %s2248 = scalar_lea.vmem %s7, %s2247
          // Predicated region
          $region65: #{tpu_custom_call.1} parent=63 // pred_check
            %p2249 = pneg %p2243
          $region66: #{tpu_custom_call.1} parent=63 // pred_check_branch
            %2251 = sbr.rel (%p2249) target = $region68
          $region67: #{tpu_custom_call.1} parent=63 // pred_region
            // Predicated region
            $region69: #{tpu_custom_call.1} parent=67 // pred_check
              _
            $region70: #{tpu_custom_call.1} parent=67 // pred_check_branch
              %2253 = sbr.rel (0) target = $region72
            $region71: #{tpu_custom_call.1} parent=67 // pred_region
              // Predicated region
              $region91: #{tpu_custom_call.1} parent=71 // pred_check
                _
              $region92: #{tpu_custom_call.1} parent=71 // pred_check_branch
                %2364 = sbr.rel (0) target = $region94
              $region93: #{tpu_custom_call.1} parent=71 // pred_region
                %s2365 = sshrl.u32 %s2241, 5
                // While loop
                $region95: #{tpu_custom_call.1} parent=93 // loop_pre_header
                  _
                $region96: #{tpu_custom_call.1} parent=93 // loop_header
                  %s2367 = sphi 0, %s2369
                  %p2368 = scmp.ge.s32.totalorder %s2367, %s2365
                  %s2372 = sphi 0, %s2441
                  %s2373 = sphi %s2234, %s2444
                  %s2374 = sphi %s2248, %s2445
                $region97: #{tpu_custom_call.1} parent=93 // loop_header_branch
                  %2371 = sbr.rel (%p2368) target = $region101
                $region98: #{tpu_custom_call.1} parent=93 // loop_body
                  %v2375 = vld [vmem:[%s2373] sm:$0xff]
                  %2376 = vst [vmem:[%s2374] sm:$0xff] %v2375
                  %v2377 = vld [vmem:[%s2373 + $0x8] sm:$0xff]
                  %2378 = vst [vmem:[%s2374 + $0x8] sm:$0xff] %v2377
                  %v2379 = vld [vmem:[%s2373 + $0x10] sm:$0xff]
                  %2380 = vst [vmem:[%s2374 + $0x10] sm:$0xff] %v2379
                  %v2381 = vld [vmem:[%s2373 + $0x18] sm:$0xff]
                  %2382 = vst [vmem:[%s2374 + $0x18] sm:$0xff] %v2381
                  %v2383 = vld [vmem:[%s2373 + $0x20] sm:$0xff]
                  %2384 = vst [vmem:[%s2374 + $0x20] sm:$0xff] %v2383
                  %v2385 = vld [vmem:[%s2373 + $0x28] sm:$0xff]
                  %2386 = vst [vmem:[%s2374 + $0x28] sm:$0xff] %v2385
                  %v2387 = vld [vmem:[%s2373 + $0x30] sm:$0xff]
                  %2388 = vst [vmem:[%s2374 + $0x30] sm:$0xff] %v2387
                  %v2389 = vld [vmem:[%s2373 + $0x38] sm:$0xff]
                  %2390 = vst [vmem:[%s2374 + $0x38] sm:$0xff] %v2389
                  %v2391 = vld [vmem:[%s2373 + $0x40] sm:$0xff]
                  %2392 = vst [vmem:[%s2374 + $0x40] sm:$0xff] %v2391
                  %v2393 = vld [vmem:[%s2373 + $0x48] sm:$0xff]
                  %2394 = vst [vmem:[%s2374 + $0x48] sm:$0xff] %v2393
                  %v2395 = vld [vmem:[%s2373 + $0x50] sm:$0xff]
                  %2396 = vst [vmem:[%s2374 + $0x50] sm:$0xff] %v2395
                  %v2397 = vld [vmem:[%s2373 + $0x58] sm:$0xff]
                  %2398 = vst [vmem:[%s2374 + $0x58] sm:$0xff] %v2397
                  %v2399 = vld [vmem:[%s2373 + $0x60] sm:$0xff]
                  %2400 = vst [vmem:[%s2374 + $0x60] sm:$0xff] %v2399
                  %v2401 = vld [vmem:[%s2373 + $0x68] sm:$0xff]
                  %2402 = vst [vmem:[%s2374 + $0x68] sm:$0xff] %v2401
                  %v2403 = vld [vmem:[%s2373 + $0x70] sm:$0xff]
                  %2404 = vst [vmem:[%s2374 + $0x70] sm:$0xff] %v2403
                  %v2405 = vld [vmem:[%s2373 + $0x78] sm:$0xff]
                  %2406 = vst [vmem:[%s2374 + $0x78] sm:$0xff] %v2405
                  %v2407 = vld [vmem:[%s2373 + $0x80] sm:$0xff]
                  %2408 = vst [vmem:[%s2374 + $0x80] sm:$0xff] %v2407
                  %v2409 = vld [vmem:[%s2373 + $0x88] sm:$0xff]
                  %2410 = vst [vmem:[%s2374 + $0x88] sm:$0xff] %v2409
                  %v2411 = vld [vmem:[%s2373 + $0x90] sm:$0xff]
                  %2412 = vst [vmem:[%s2374 + $0x90] sm:$0xff] %v2411
                  %v2413 = vld [vmem:[%s2373 + $0x98] sm:$0xff]
                  %2414 = vst [vmem:[%s2374 + $0x98] sm:$0xff] %v2413
                  %v2415 = vld [vmem:[%s2373 + $0xa0] sm:$0xff]
                  %2416 = vst [vmem:[%s2374 + $0xa0] sm:$0xff] %v2415
                  %v2417 = vld [vmem:[%s2373 + $0xa8] sm:$0xff]
                  %2418 = vst [vmem:[%s2374 + $0xa8] sm:$0xff] %v2417
                  %v2419 = vld [vmem:[%s2373 + $0xb0] sm:$0xff]
                  %2420 = vst [vmem:[%s2374 + $0xb0] sm:$0xff] %v2419
                  %v2421 = vld [vmem:[%s2373 + $0xb8] sm:$0xff]
                  %2422 = vst [vmem:[%s2374 + $0xb8] sm:$0xff] %v2421
                  %v2423 = vld [vmem:[%s2373 + $0xc0] sm:$0xff]
                  %2424 = vst [vmem:[%s2374 + $0xc0] sm:$0xff] %v2423
                  %v2425 = vld [vmem:[%s2373 + $0xc8] sm:$0xff]
                  %2426 = vst [vmem:[%s2374 + $0xc8] sm:$0xff] %v2425
                  %v2427 = vld [vmem:[%s2373 + $0xd0] sm:$0xff]
                  %2428 = vst [vmem:[%s2374 + $0xd0] sm:$0xff] %v2427
                  %v2429 = vld [vmem:[%s2373 + $0xd8] sm:$0xff]
                  %2430 = vst [vmem:[%s2374 + $0xd8] sm:$0xff] %v2429
                  %v2431 = vld [vmem:[%s2373 + $0xe0] sm:$0xff]
                  %2432 = vst [vmem:[%s2374 + $0xe0] sm:$0xff] %v2431
                  %v2433 = vld [vmem:[%s2373 + $0xe8] sm:$0xff]
                  %2434 = vst [vmem:[%s2374 + $0xe8] sm:$0xff] %v2433
                  %v2435 = vld [vmem:[%s2373 + $0xf0] sm:$0xff]
                  %2436 = vst [vmem:[%s2374 + $0xf0] sm:$0xff] %v2435
                  %v2437 = vld [vmem:[%s2373 + $0xf8] sm:$0xff]
                  %2438 = vst [vmem:[%s2374 + $0xf8] sm:$0xff] %v2437
                  %s2439 = sadd.s32 1, %s2372
                  %p2440 = scmp.ge.s32.totalorder %s2439, %s2365
                  %s2441 = scalar_select %p2440, 0, %s2439
                  %s2442 = smul.u32 %s2441, 256
                  %s2443 = smul.u32 %s2441, 256
                  %s2444 = scalar_lea.vmem %s2234, %s2442 [#allocation4]
                  %s2445 = scalar_lea.vmem %s2248, %s2443
                $region99: #{tpu_custom_call.1} parent=93 // loop_footer
                  %s2369 = sadd.s32 %s2367, 1
                $region100: #{tpu_custom_call.1} parent=93 // loop_footer_branch
                  %2366 = sbr.rel target = $region96
                $region101: #{tpu_custom_call.1} parent=93 // loop_exit
                  _
                %s2446 = sshrl.u32 %s2241, 5
                %s2447 = sand.u32 %s2241, 31
                %s2448 = smul.u32 %s2446, 32
                %s2449 = smul.u32 8, %s2448
                %s2450 = scalar_lea.vmem %s2234, %s2449 [#allocation4]
                %s2451 = smul.u32 8, %s2448
                %s2452 = scalar_lea.vmem %s2248, %s2451
                // While loop
                $region102: #{tpu_custom_call.1} parent=93 // loop_pre_header
                  _
                $region103: #{tpu_custom_call.1} parent=93 // loop_header
                  %s2454 = sphi 0, %s2456
                  %p2455 = scmp.ge.s32.totalorder %s2454, %s2447
                  %s2459 = sphi 0, %s2466
                  %s2460 = sphi %s2450, %s2469
                  %s2461 = sphi %s2452, %s2470
                $region104: #{tpu_custom_call.1} parent=93 // loop_header_branch
                  %2458 = sbr.rel (%p2455) target = $region108
                $region105: #{tpu_custom_call.1} parent=93 // loop_body
                  %v2462 = vld [vmem:[%s2460] sm:$0xff]
                  %2463 = vst [vmem:[%s2461] sm:$0xff] %v2462
                  %s2464 = sadd.s32 1, %s2459
                  %p2465 = scmp.ge.s32.totalorder %s2464, %s2447
                  %s2466 = scalar_select %p2465, 0, %s2464
                  %s2467 = smul.u32 %s2466, 8
                  %s2468 = smul.u32 %s2466, 8
                  %s2469 = scalar_lea.vmem %s2450, %s2467 [#allocation4]
                  %s2470 = scalar_lea.vmem %s2452, %s2468
                $region106: #{tpu_custom_call.1} parent=93 // loop_footer
                  %s2456 = sadd.s32 %s2454, 1
                $region107: #{tpu_custom_call.1} parent=93 // loop_footer_branch
                  %2453 = sbr.rel target = $region103
                $region108: #{tpu_custom_call.1} parent=93 // loop_exit
                  _
              $region94: #{tpu_custom_call.1} parent=71 // pred_fallthru
                _
              // Predicated region
              $region109: #{tpu_custom_call.1} parent=71 // pred_check
                _
              $region110: #{tpu_custom_call.1} parent=71 // pred_check_branch
                %2472 = sbr.rel target = $region112
              $region111: #{tpu_custom_call.1} parent=71 // pred_region
                _
              $region112: #{tpu_custom_call.1} parent=71 // pred_fallthru
                _
            $region72: #{tpu_custom_call.1} parent=67 // pred_fallthru
              _
            // Predicated region
            $region73: #{tpu_custom_call.1} parent=67 // pred_check
              _
            $region74: #{tpu_custom_call.1} parent=67 // pred_check_branch
              %2255 = sbr.rel target = $region76
            $region75: #{tpu_custom_call.1} parent=67 // pred_region
              %s2257 = sshrl.u32 %s2241, 5
              // While loop
              $region77: #{tpu_custom_call.1} parent=75 // loop_pre_header
                _
              $region78: #{tpu_custom_call.1} parent=75 // loop_header
                %s2259 = sphi 0, %s2261
                %p2260 = scmp.ge.s32.totalorder %s2259, %s2257
                %s2264 = sphi 0, %s2333
                %s2265 = sphi %s2234, %s2336
                %s2266 = sphi %s2248, %s2337
              $region79: #{tpu_custom_call.1} parent=75 // loop_header_branch
                %2263 = sbr.rel (%p2260) target = $region83
              $region80: #{tpu_custom_call.1} parent=75 // loop_body
                %v2267 = vld [vmem:[%s2265] sm:$0xff]
                %2268 = vst [vmem:[%s2266] sm:$0xff] %v2267
                %v2269 = vld [vmem:[%s2265 + $0x8] sm:$0xff]
                %2270 = vst [vmem:[%s2266 + $0x8] sm:$0xff] %v2269
                %v2271 = vld [vmem:[%s2265 + $0x10] sm:$0xff]
                %2272 = vst [vmem:[%s2266 + $0x10] sm:$0xff] %v2271
                %v2273 = vld [vmem:[%s2265 + $0x18] sm:$0xff]
                %2274 = vst [vmem:[%s2266 + $0x18] sm:$0xff] %v2273
                %v2275 = vld [vmem:[%s2265 + $0x20] sm:$0xff]
                %2276 = vst [vmem:[%s2266 + $0x20] sm:$0xff] %v2275
                %v2277 = vld [vmem:[%s2265 + $0x28] sm:$0xff]
                %2278 = vst [vmem:[%s2266 + $0x28] sm:$0xff] %v2277
                %v2279 = vld [vmem:[%s2265 + $0x30] sm:$0xff]
                %2280 = vst [vmem:[%s2266 + $0x30] sm:$0xff] %v2279
                %v2281 = vld [vmem:[%s2265 + $0x38] sm:$0xff]
                %2282 = vst [vmem:[%s2266 + $0x38] sm:$0xff] %v2281
                %v2283 = vld [vmem:[%s2265 + $0x40] sm:$0xff]
                %2284 = vst [vmem:[%s2266 + $0x40] sm:$0xff] %v2283
                %v2285 = vld [vmem:[%s2265 + $0x48] sm:$0xff]
                %2286 = vst [vmem:[%s2266 + $0x48] sm:$0xff] %v2285
                %v2287 = vld [vmem:[%s2265 + $0x50] sm:$0xff]
                %2288 = vst [vmem:[%s2266 + $0x50] sm:$0xff] %v2287
                %v2289 = vld [vmem:[%s2265 + $0x58] sm:$0xff]
                %2290 = vst [vmem:[%s2266 + $0x58] sm:$0xff] %v2289
                %v2291 = vld [vmem:[%s2265 + $0x60] sm:$0xff]
                %2292 = vst [vmem:[%s2266 + $0x60] sm:$0xff] %v2291
                %v2293 = vld [vmem:[%s2265 + $0x68] sm:$0xff]
                %2294 = vst [vmem:[%s2266 + $0x68] sm:$0xff] %v2293
                %v2295 = vld [vmem:[%s2265 + $0x70] sm:$0xff]
                %2296 = vst [vmem:[%s2266 + $0x70] sm:$0xff] %v2295
                %v2297 = vld [vmem:[%s2265 + $0x78] sm:$0xff]
                %2298 = vst [vmem:[%s2266 + $0x78] sm:$0xff] %v2297
                %v2299 = vld [vmem:[%s2265 + $0x80] sm:$0xff]
                %2300 = vst [vmem:[%s2266 + $0x80] sm:$0xff] %v2299
                %v2301 = vld [vmem:[%s2265 + $0x88] sm:$0xff]
                %2302 = vst [vmem:[%s2266 + $0x88] sm:$0xff] %v2301
                %v2303 = vld [vmem:[%s2265 + $0x90] sm:$0xff]
                %2304 = vst [vmem:[%s2266 + $0x90] sm:$0xff] %v2303
                %v2305 = vld [vmem:[%s2265 + $0x98] sm:$0xff]
                %2306 = vst [vmem:[%s2266 + $0x98] sm:$0xff] %v2305
                %v2307 = vld [vmem:[%s2265 + $0xa0] sm:$0xff]
                %2308 = vst [vmem:[%s2266 + $0xa0] sm:$0xff] %v2307
                %v2309 = vld [vmem:[%s2265 + $0xa8] sm:$0xff]
                %2310 = vst [vmem:[%s2266 + $0xa8] sm:$0xff] %v2309
                %v2311 = vld [vmem:[%s2265 + $0xb0] sm:$0xff]
                %2312 = vst [vmem:[%s2266 + $0xb0] sm:$0xff] %v2311
                %v2313 = vld [vmem:[%s2265 + $0xb8] sm:$0xff]
                %2314 = vst [vmem:[%s2266 + $0xb8] sm:$0xff] %v2313
                %v2315 = vld [vmem:[%s2265 + $0xc0] sm:$0xff]
                %2316 = vst [vmem:[%s2266 + $0xc0] sm:$0xff] %v2315
                %v2317 = vld [vmem:[%s2265 + $0xc8] sm:$0xff]
                %2318 = vst [vmem:[%s2266 + $0xc8] sm:$0xff] %v2317
                %v2319 = vld [vmem:[%s2265 + $0xd0] sm:$0xff]
                %2320 = vst [vmem:[%s2266 + $0xd0] sm:$0xff] %v2319
                %v2321 = vld [vmem:[%s2265 + $0xd8] sm:$0xff]
                %2322 = vst [vmem:[%s2266 + $0xd8] sm:$0xff] %v2321
                %v2323 = vld [vmem:[%s2265 + $0xe0] sm:$0xff]
                %2324 = vst [vmem:[%s2266 + $0xe0] sm:$0xff] %v2323
                %v2325 = vld [vmem:[%s2265 + $0xe8] sm:$0xff]
                %2326 = vst [vmem:[%s2266 + $0xe8] sm:$0xff] %v2325
                %v2327 = vld [vmem:[%s2265 + $0xf0] sm:$0xff]
                %2328 = vst [vmem:[%s2266 + $0xf0] sm:$0xff] %v2327
                %v2329 = vld [vmem:[%s2265 + $0xf8] sm:$0xff]
                %2330 = vst [vmem:[%s2266 + $0xf8] sm:$0xff] %v2329
                %s2331 = sadd.s32 1, %s2264
                %p2332 = scmp.ge.s32.totalorder %s2331, %s2257
                %s2333 = scalar_select %p2332, 0, %s2331
                %s2334 = smul.u32 %s2333, 256
                %s2335 = smul.u32 %s2333, 256
                %s2336 = scalar_lea.vmem %s2234, %s2334 [#allocation4]
                %s2337 = scalar_lea.vmem %s2248, %s2335
              $region81: #{tpu_custom_call.1} parent=75 // loop_footer
                %s2261 = sadd.s32 %s2259, 1
              $region82: #{tpu_custom_call.1} parent=75 // loop_footer_branch
                %2258 = sbr.rel target = $region78
              $region83: #{tpu_custom_call.1} parent=75 // loop_exit
                _
              %s2338 = sshrl.u32 %s2241, 5
              %s2339 = sand.u32 %s2241, 31
              %s2340 = smul.u32 %s2338, 32
              %s2341 = smul.u32 8, %s2340
              %s2342 = scalar_lea.vmem %s2234, %s2341 [#allocation4]
              %s2343 = smul.u32 8, %s2340
              %s2344 = scalar_lea.vmem %s2248, %s2343
              // While loop
              $region84: #{tpu_custom_call.1} parent=75 // loop_pre_header
                _
              $region85: #{tpu_custom_call.1} parent=75 // loop_header
                %s2346 = sphi 0, %s2348
                %p2347 = scmp.ge.s32.totalorder %s2346, %s2339
                %s2351 = sphi 0, %s2358
                %s2352 = sphi %s2342, %s2361
                %s2353 = sphi %s2344, %s2362
              $region86: #{tpu_custom_call.1} parent=75 // loop_header_branch
                %2350 = sbr.rel (%p2347) target = $region90
              $region87: #{tpu_custom_call.1} parent=75 // loop_body
                %v2354 = vld [vmem:[%s2352] sm:$0xff]
                %2355 = vst [vmem:[%s2353] sm:$0xff] %v2354
                %s2356 = sadd.s32 1, %s2351
                %p2357 = scmp.ge.s32.totalorder %s2356, %s2339
                %s2358 = scalar_select %p2357, 0, %s2356
                %s2359 = smul.u32 %s2358, 8
                %s2360 = smul.u32 %s2358, 8
                %s2361 = scalar_lea.vmem %s2342, %s2359 [#allocation4]
                %s2362 = scalar_lea.vmem %s2344, %s2360
              $region88: #{tpu_custom_call.1} parent=75 // loop_footer
                %s2348 = sadd.s32 %s2346, 1
              $region89: #{tpu_custom_call.1} parent=75 // loop_footer_branch
                %2345 = sbr.rel target = $region85
              $region90: #{tpu_custom_call.1} parent=75 // loop_exit
                _
            $region76: #{tpu_custom_call.1} parent=67 // pred_fallthru
              _
          $region68: #{tpu_custom_call.1} parent=63 // pred_fallthru
            _
          %2473 = vnop
        $region64: #{tpu_custom_call.1} parent=47 // pred_fallthru
          _
      $region48: #{tpu_custom_call.1} parent=5 // pred_fallthru
        _
      %p2474 = scmp.le.s32.totalorder 2, %s13
      // Predicated region
      $region113: #{tpu_custom_call.1} parent=5 // pred_check
        %p2475 = pneg %p2474
      $region114: #{tpu_custom_call.1} parent=5 // pred_check_branch
        %2477 = sbr.rel (%p2475) target = $region116
      $region115: #{tpu_custom_call.1} parent=5 // pred_region
        %s2478 = ssub.s32 %s13, 2
        // Predicated region
        $region117: #{tpu_custom_call.1} parent=115 // pred_check
          %p2479 = pneg %p263
        $region118: #{tpu_custom_call.1} parent=115 // pred_check_branch
          %2481 = sbr.rel (%p2479) target = $region120
        $region119: #{tpu_custom_call.1} parent=115 // pred_region
          %s2482 = sand.u32 %s248, 1
          %s2483 = sand.u32 %s248, 1
          %s2484 = smul.addr %s2483, 256
          %s2485 = scalar_lea.vmem [#allocation4], %s2484
        $region120: #{tpu_custom_call.1} parent=115 // pred_fallthru
          _
      $region116: #{tpu_custom_call.1} parent=5 // pred_fallthru
        _
    $region6: #{tpu_custom_call.1} parent=1 // loop_footer
      %s17 = sadd.s32 1, %s13
    $region7: #{tpu_custom_call.1} parent=1 // loop_footer_branch
      %12 = sbr.rel target = $region3
    $region8: #{tpu_custom_call.1} parent=1 // loop_exit
      _

</llo_original>
